<compile_context>
chip_gen: v6e
topology: v6e:2x2x1
jax: 0.10.0
libtpu: 0.0.40
codegen_flags: <defaults>
</compile_context>

<pallas_src>
from functools import lru_cache, partial

import numpy as np
import jax
import jax.numpy as jnp
from jax.experimental import pallas as pl
from jax.experimental.pallas import tpu as pltpu


@lru_cache(maxsize=None)
def _selection_matrix(N, K, Q, eb):
    """Block-diagonal selection matrix, built once per (N, K, Q, eb) and cached.

    Per episode block: first N*Q rows pick the query examples ({0,1} one-hots),
    last N rows SUM the K support shots of each class (all-ones, 1/K applied later).
    """
    P = N * (K + Q)
    NQ = N * Q
    R = NQ + N
    sel = np.zeros((eb * R, eb * P), np.float32)
    for e in range(eb):
        r0, c0 = e * R, e * P
        for n in range(N):
            for q in range(Q):
                sel[r0 + n * Q + q, c0 + n * (K + Q) + K + q] = 1.0
            sel[r0 + NQ + n, c0 + n * (K + Q): c0 + n * (K + Q) + K] = 1.0
    return sel


def _tensorcores_per_chip():
    """1 TC on v5e/v6e, 2 TCs on v7x (best-effort; defaults to 1)."""
    try:
        kind = jax.devices()[0].device_kind.lower()
    except Exception:
        return 1
    return 2 if "v7" in kind else 1


def make_proto_kernel(N, K, Q, eb):
    NQ = N * Q
    R = NQ + N
    inv_k = float(1.0 / K)

    def kernel(x_ref, w_ref, sel_ref, out_ref):
        # x_ref:   (1, eb*P, D_in) f32  encoder embeddings (cast to bf16 in-kernel)
        # w_ref:   (D_in, H)       bf16 head weight (constant block -> VMEM-resident)
        # sel_ref: (eb*R, eb*P)    f32  block-diagonal {0,1} query-pick / support-sum
        # out_ref: (eb, NQ, N)     f32  prototypical logits
        xb = x_ref[0].astype(jnp.bfloat16)                                   # VPU cast, hidden under DMA
        emb = jnp.dot(xb, w_ref[...],
                      preferred_element_type=jnp.float32)                    # (eb*P, H)  one MXU pass
        qp = jnp.dot(sel_ref[...], emb,
                     preferred_element_type=jnp.float32)                     # (eb*R, H)  tiny selection matmul
        for e in range(eb):                                                  # eb is 1 or 2 (static)
            blk = qp[e * R:(e + 1) * R]                                      # (R, H)
            queries = blk[:NQ]                                               # (NQ, H) exact rows of emb
            protos = blk[NQ:] * inv_k                                        # (N, H)  exact 1/K mean in f32
            diff = queries[:, None, :] - protos[None, :, :]                  # (NQ, N, H)
            out_ref[e] = -jnp.sum(diff * diff, axis=-1)                      # (NQ, N) direct squared distance

    return kernel


@partial(jax.jit, static_argnames=("N", "K", "Q"))
def prototypical_forward(x, w_bf16, N, K, Q):
    """x: (B, N*(K+Q), D_in) f32 encoder embeddings; w_bf16: (D_in, H) head weight in bf16."""
    B, P, D_in = x.shape
    H = w_bf16.shape[1]
    assert P == N * (K + Q)
    NQ = N * Q
    R = NQ + N

    # 1 grid block on single-TC chips (v5e/v6e); 2 blocks only to shard across v7x's 2 TCs.
    nb = 2 if (_tensorcores_per_chip() == 2 and B >= 2 and B % 2 == 0) else 1
    eb = B // nb

    sel = jnp.asarray(_selection_matrix(N, K, Q, eb))     # cached, baked in as a constant
    x3 = x.reshape(nb, eb * P, D_in)                      # free view of contiguous HBM

    flops = int(2 * B * P * D_in * H + 2 * B * R * P * H + 3 * B * NQ * N * H)
    bytes_accessed = int(x.size * x.dtype.itemsize
                         + w_bf16.size * w_bf16.dtype.itemsize
                         + sel.size * 4 + B * NQ * N * 4)

    out = pl.pallas_call(
        make_proto_kernel(N, K, Q, eb),
        out_shape=jax.ShapeDtypeStruct((B, NQ, N), jnp.float32),
        grid_spec=pltpu.PrefetchScalarGridSpec(
            num_scalar_prefetch=0,
            grid=(nb,),
            in_specs=[
                pl.BlockSpec((1, eb * P, D_in), lambda b: (b, 0, 0)),
                pl.BlockSpec((D_in, H), lambda b: (0, 0)),      # weight stays resident in VMEM
                pl.BlockSpec((eb * R, eb * P), lambda b: (0, 0)),
            ],
            out_specs=pl.BlockSpec((eb, NQ, N), lambda b: (b, 0, 0)),
        ),
        compiler_params=pltpu.CompilerParams(
            dimension_semantics=("parallel",)),
        cost_estimate=pl.CostEstimate(flops=flops, transcendentals=0,
                                      bytes_accessed=bytes_accessed),
    )(x3, w_bf16, sel)

    # PyTorch `squeeze(0)` only drops dim 0 when it has size 1.
    if out.shape[0] == 1:
        out = out[0]
    return out


def reference(x, w, N, K, Q):
    """Pure-JAX mirror of PrototypicalNetwork_template.process_hiddens(head(x))."""
    B, P, _ = x.shape
    emb = jnp.einsum('bpd,dh->bph', x, w)
    D = emb.shape[-1]
    emb = emb.reshape(B, N, K + Q, D)
    support = emb[:, :, :K, :]
    query = emb[:, :, K:, :]
    protos = support.mean(axis=2)                       # (B, N, D)
    query = query.reshape(B, N * Q, D)
    err = query[:, :, None, :] - protos[:, None, :, :]  # (B, N*Q, N, D)
    logits = -jnp.sum(err ** 2, axis=3)                 # (B, N*Q, N)
    if logits.shape[0] == 1:
        logits = logits[0]
    return logits


if __name__ == "__main__":
    # Small few-shot episode: B=2 episodes, N=4 ways, K=3 shots, Q=2 queries.
    B, N, K, Q = 2, 4, 3, 2
    D_in, H = 3072, 128          # head: Linear(3072, hidden_size=128, bias=False)
    P = N * (K + Q)

    key = jax.random.PRNGKey(0)
    kx, kw = jax.random.split(key)
    # Stand-in for encoder(batch)['last_hidden_state_at_mask'], viewed as (B, P, D_in).
    x = jax.random.normal(kx, (B, P, D_in), jnp.float32)
    # Head weight: deterministic init, cast to bf16 ONCE at parameter-init time.
    w_f32 = jax.random.normal(kw, (D_in, H), jnp.float32) * (1.0 / np.sqrt(D_in))
    w_bf16 = w_f32.astype(jnp.bfloat16)

    out = jax.block_until_ready(prototypical_forward(x, w_bf16, N, K, Q))
    assert out.shape == (B, N * Q, N), out.shape

    # Tight check: same bf16-quantized inputs, f32 math (validates kernel algebra).
    xq = x.astype(jnp.bfloat16).astype(jnp.float32)
    wq = w_bf16.astype(jnp.float32)
    ref_q = reference(xq, wq, N, K, Q)
    np.testing.assert_allclose(np.asarray(out), np.asarray(ref_q), rtol=2e-3, atol=2e-3)

    # Loose end-to-end check vs. the full-f32 reference (bf16 quantization of x and w).
    ref_f = reference(x, w_f32, N, K, Q)
    np.testing.assert_allclose(np.asarray(out), np.asarray(ref_f), rtol=2e-2, atol=1e-1)

    print("KERNEL_OK")
</pallas_src>

<mosaic_0001>
module attributes {stable_mosaic.version = 11 : i64} {
  func.func @kernel(%arg0: i32, %arg1: memref<1x40x3072xf32, #tpu.memory_space<vmem>>, %arg2: memref<3072x128xbf16, #tpu.memory_space<vmem>>, %arg3: memref<24x40xf32, #tpu.memory_space<vmem>>, %arg4: memref<2x8x4xf32, #tpu.memory_space<vmem>>) attributes {dimension_semantics = [#tpu.dimension_semantics<parallel>], iteration_bounds = array<i64: 1>, scalar_prefetch = 0 : i64, scratch_operands = 0 : i64, tpu.core_type = #tpu.core_type<tc>, window_params = [{transform_indices = @transform_0, window_bounds = array<i64: 1, 40, 3072>}, {pipeline_mode = #tpu.pipeline_mode<synchronous>, transform_indices = @transform_1, window_bounds = array<i64: 3072, 128>}, {pipeline_mode = #tpu.pipeline_mode<synchronous>, transform_indices = @transform_2, window_bounds = array<i64: 24, 40>}, {transform_indices = @transform_3, window_bounds = array<i64: 2, 8, 4>}]} {
    %c0 = arith.constant 0 : index
    %c0_0 = arith.constant 0 : index
    %c0_1 = arith.constant 0 : index
    %0 = vector.load %arg1[%c0, %c0_0, %c0_1] : memref<1x40x3072xf32, #tpu.memory_space<vmem>>, vector<1x40x3072xf32>
    %1 = vector.shape_cast %0 : vector<1x40x3072xf32> to vector<40x3072xf32>
    %2 = arith.truncf %1 : vector<40x3072xf32> to vector<40x3072xbf16>
    %c0_2 = arith.constant 0 : index
    %c0_3 = arith.constant 0 : index
    %3 = vector.load %arg2[%c0_2, %c0_3] : memref<3072x128xbf16, #tpu.memory_space<vmem>>, vector<3072x128xbf16>
    %cst = arith.constant dense<0.000000e+00> : vector<40x128xf32>
    %4 = tpu.matmul %2, %3, %cst {dimension_numbers = #tpu.dot_dimension_numbers<[1], [0], [0], [1], [0, 0, 1, 1], [], []>} : vector<40x3072xbf16>, vector<3072x128xbf16>, vector<40x128xf32> -> vector<40x128xf32>
    %c0_4 = arith.constant 0 : index
    %c0_5 = arith.constant 0 : index
    %5 = vector.load %arg3[%c0_4, %c0_5] : memref<24x40xf32, #tpu.memory_space<vmem>>, vector<24x40xf32>
    %cst_6 = arith.constant dense<0.000000e+00> : vector<24x128xf32>
    %6 = tpu.matmul %5, %4, %cst_6 {dimension_numbers = #tpu.dot_dimension_numbers<[1], [0], [0], [1], [0, 0, 1, 1], [], []>} : vector<24x40xf32>, vector<40x128xf32>, vector<24x128xf32> -> vector<24x128xf32>
    %7 = vector.extract_strided_slice %6 {offsets = [0, 0], sizes = [12, 128], strides = [1, 1]} : vector<24x128xf32> to vector<12x128xf32>
    %8 = vector.extract_strided_slice %7 {offsets = [0, 0], sizes = [8, 128], strides = [1, 1]} : vector<12x128xf32> to vector<8x128xf32>
    %9 = vector.extract_strided_slice %7 {offsets = [8, 0], sizes = [4, 128], strides = [1, 1]} : vector<12x128xf32> to vector<4x128xf32>
    %cst_7 = arith.constant 0.333333343 : f32
    %10 = vector.broadcast %cst_7 : f32 to vector<4x128xf32>
    %11 = arith.mulf %9, %10 : vector<4x128xf32>
    %12 = vector.shape_cast %8 : vector<8x128xf32> to vector<8x1x128xf32>
    %13 = vector.shape_cast %11 : vector<4x128xf32> to vector<1x4x128xf32>
    %14 = vector.broadcast %12 : vector<8x1x128xf32> to vector<8x4x128xf32>
    %15 = vector.broadcast %13 : vector<1x4x128xf32> to vector<8x4x128xf32>
    %16 = arith.subf %14, %15 : vector<8x4x128xf32>
    %17 = arith.mulf %16, %16 : vector<8x4x128xf32>
    %cst_8 = arith.constant dense<0.000000e+00> : vector<8x4xf32>
    %18 = vector.multi_reduction <add>, %17, %cst_8 [2] : vector<8x4x128xf32> to vector<8x4xf32>
    %cst_9 = arith.constant 0.000000e+00 : f32
    %19 = vector.broadcast %cst_9 : f32 to vector<8x4xf32>
    %20 = arith.subf %19, %18 : vector<8x4xf32>
    %c0_10 = arith.constant 0 : index
    %c0_11 = arith.constant 0 : index
    %c0_12 = arith.constant 0 : index
    %21 = vector.load %arg4[%c0_10, %c0_11, %c0_12] : memref<2x8x4xf32, #tpu.memory_space<vmem>>, vector<1x8x4xf32>
    %22 = vector.shape_cast %21 : vector<1x8x4xf32> to vector<8x4xf32>
    %23 = vector.shape_cast %20 : vector<8x4xf32> to vector<1x8x4xf32>
    tpu.vector_store %arg4[%c0_10, %c0_11, %c0_12], %23 {strides = array<i32>} : memref<2x8x4xf32, #tpu.memory_space<vmem>>, vector<1x8x4xf32>,
    %24 = vector.extract_strided_slice %6 {offsets = [12, 0], sizes = [12, 128], strides = [1, 1]} : vector<24x128xf32> to vector<12x128xf32>
    %25 = vector.extract_strided_slice %24 {offsets = [0, 0], sizes = [8, 128], strides = [1, 1]} : vector<12x128xf32> to vector<8x128xf32>
    %26 = vector.extract_strided_slice %24 {offsets = [8, 0], sizes = [4, 128], strides = [1, 1]} : vector<12x128xf32> to vector<4x128xf32>
    %cst_13 = arith.constant 0.333333343 : f32
    %27 = vector.broadcast %cst_13 : f32 to vector<4x128xf32>
    %28 = arith.mulf %26, %27 : vector<4x128xf32>
    %29 = vector.shape_cast %25 : vector<8x128xf32> to vector<8x1x128xf32>
    %30 = vector.shape_cast %28 : vector<4x128xf32> to vector<1x4x128xf32>
    %31 = vector.broadcast %29 : vector<8x1x128xf32> to vector<8x4x128xf32>
    %32 = vector.broadcast %30 : vector<1x4x128xf32> to vector<8x4x128xf32>
    %33 = arith.subf %31, %32 : vector<8x4x128xf32>
    %34 = arith.mulf %33, %33 : vector<8x4x128xf32>
    %cst_14 = arith.constant dense<0.000000e+00> : vector<8x4xf32>
    %35 = vector.multi_reduction <add>, %34, %cst_14 [2] : vector<8x4x128xf32> to vector<8x4xf32>
    %cst_15 = arith.constant 0.000000e+00 : f32
    %36 = vector.broadcast %cst_15 : f32 to vector<8x4xf32>
    %37 = arith.subf %36, %35 : vector<8x4xf32>
    %c1 = arith.constant 1 : index
    %c0_16 = arith.constant 0 : index
    %c0_17 = arith.constant 0 : index
    %38 = vector.load %arg4[%c1, %c0_16, %c0_17] : memref<2x8x4xf32, #tpu.memory_space<vmem>>, vector<1x8x4xf32>
    %39 = vector.shape_cast %38 : vector<1x8x4xf32> to vector<8x4xf32>
    %40 = vector.shape_cast %37 : vector<8x4xf32> to vector<1x8x4xf32>
    tpu.vector_store %arg4[%c1, %c0_16, %c0_17], %40 {strides = array<i32>} : memref<2x8x4xf32, #tpu.memory_space<vmem>>, vector<1x8x4xf32>,
    return
  }
  func.func @transform_0(%arg0: i32) -> (i32, i32, i32) {
    %c0_i32 = arith.constant 0 : i32
    %c0_i32_0 = arith.constant 0 : i32
    %c0_i32_1 = arith.constant 0 : i32
    return %arg0, %c0_i32, %c0_i32_0 : i32, i32, i32
  }
  func.func @transform_1(%arg0: i32) -> (i32, i32) {
    %c0_i32 = arith.constant 0 : i32
    %c0_i32_0 = arith.constant 0 : i32
    %c0_i32_1 = arith.constant 0 : i32
    return %c0_i32, %c0_i32_0 : i32, i32
  }
  func.func @transform_2(%arg0: i32) -> (i32, i32) {
    %c0_i32 = arith.constant 0 : i32
    %c0_i32_0 = arith.constant 0 : i32
    %c0_i32_1 = arith.constant 0 : i32
    return %c0_i32, %c0_i32_0 : i32, i32
  }
  func.func @transform_3(%arg0: i32) -> (i32, i32, i32) {
    %c0_i32 = arith.constant 0 : i32
    %c0_i32_0 = arith.constant 0 : i32
    %c0_i32_1 = arith.constant 0 : i32
    return %arg0, %c0_i32, %c0_i32_0 : i32, i32, i32
  }
}

</mosaic_0001>

<llo_original>
// kernel: prototypical_forward.1
$region0: #{prototypical_forward.1}
  #allocation0 [shape = 'u32[]', space=smem, size = 0x4, offset = 0x4, fixed_abs, tag = 'smem constant byte address 0x4 - core index']
  #allocation1 [shape = 'u32[144,128]{1,0:T(1,128)}', space=vmem, size = 0x12000, scoped, tag = 'internal scratch']
  %s0 = inlined_call_operand.vmem [shape: f32[1,40,3072], index: 0, kind: input, shape index: {}]
  %s1 = inlined_call_operand.vmem [shape: bf16[3072,128], index: 1, kind: input, shape index: {}]
  %s2 = inlined_call_operand.vmem [shape: f32[24,40], index: 2, kind: input, shape index: {}]
  %s3 = inlined_call_operand.vmem [shape: f32[2,8,4], index: 3, kind: output, shape index: {}]
  %s4 = sld [smem:[#allocation0]]
  $region22: #{prototypical_forward.1} parent=0
    _
  %s6 = ssub.s32 1, %s4
  %s7 = scalar_select 0, %s6, %s4
  // Predicated region
  $region2: #{prototypical_forward.1} parent=0 // pred_check
    _
  $region3: #{prototypical_forward.1} parent=0 // pred_check_branch
    %9 = sbr.rel (0) target = $region5
  $region4: #{prototypical_forward.1} parent=0 // pred_region
    _
  $region5: #{prototypical_forward.1} parent=0 // pred_fallthru
    _
  // Predicated region
  $region6: #{prototypical_forward.1} parent=0 // pred_check
    _
  $region7: #{prototypical_forward.1} parent=0 // pred_check_branch
    %11 = sbr.rel (0) target = $region9
  $region8: #{prototypical_forward.1} parent=0 // pred_region
    _
  $region9: #{prototypical_forward.1} parent=0 // pred_fallthru
    _
  // Predicated region
  $region10: #{prototypical_forward.1} parent=0 // pred_check
    _
  $region11: #{prototypical_forward.1} parent=0 // pred_check_branch
    %13 = sbr.rel (0) target = $region13
  $region12: #{prototypical_forward.1} parent=0 // pred_region
    _
  $region13: #{prototypical_forward.1} parent=0 // pred_fallthru
    _
  %v15 = vld [vmem:[%s0] sm:$0xff]
  %v16 = vld [vmem:[%s0 + $0x8] sm:$0xff]
  %v17 = vld [vmem:[%s0 + $0x10] sm:$0xff]
  %v18 = vld [vmem:[%s0 + $0x18] sm:$0xff]
  %v19 = vld [vmem:[%s0 + $0x20] sm:$0xff]
  %v20 = vld [vmem:[%s0 + $0x28] sm:$0xff]
  %v21 = vld [vmem:[%s0 + $0x30] sm:$0xff]
  %v22 = vld [vmem:[%s0 + $0x38] sm:$0xff]
  %v23 = vld [vmem:[%s0 + $0x40] sm:$0xff]
  %v24 = vld [vmem:[%s0 + $0x48] sm:$0xff]
  %v25 = vld [vmem:[%s0 + $0x50] sm:$0xff]
  %v26 = vld [vmem:[%s0 + $0x58] sm:$0xff]
  %v27 = vld [vmem:[%s0 + $0x60] sm:$0xff]
  %v28 = vld [vmem:[%s0 + $0x68] sm:$0xff]
  %v29 = vld [vmem:[%s0 + $0x70] sm:$0xff]
  %v30 = vld [vmem:[%s0 + $0x78] sm:$0xff]
  %v31 = vld [vmem:[%s0 + $0x80] sm:$0xff]
  %v32 = vld [vmem:[%s0 + $0x88] sm:$0xff]
  %v33 = vld [vmem:[%s0 + $0x90] sm:$0xff]
  %v34 = vld [vmem:[%s0 + $0x98] sm:$0xff]
  %v35 = vld [vmem:[%s0 + $0xa0] sm:$0xff]
  %v36 = vld [vmem:[%s0 + $0xa8] sm:$0xff]
  %v37 = vld [vmem:[%s0 + $0xb0] sm:$0xff]
  %v38 = vld [vmem:[%s0 + $0xb8] sm:$0xff]
  %v39 = vld [vmem:[%s0 + $0xc0] sm:$0xff]
  %v40 = vld [vmem:[%s0 + $0xc8] sm:$0xff]
  %v41 = vld [vmem:[%s0 + $0xd0] sm:$0xff]
  %v42 = vld [vmem:[%s0 + $0xd8] sm:$0xff]
  %v43 = vld [vmem:[%s0 + $0xe0] sm:$0xff]
  %v44 = vld [vmem:[%s0 + $0xe8] sm:$0xff]
  %v45 = vld [vmem:[%s0 + $0xf0] sm:$0xff]
  %v46 = vld [vmem:[%s0 + $0xf8] sm:$0xff]
  %v47 = vld [vmem:[%s0 + $0x100] sm:$0xff]
  %v48 = vld [vmem:[%s0 + $0x108] sm:$0xff]
  %v49 = vld [vmem:[%s0 + $0x110] sm:$0xff]
  %v50 = vld [vmem:[%s0 + $0x118] sm:$0xff]
  %v51 = vld [vmem:[%s0 + $0x120] sm:$0xff]
  %v52 = vld [vmem:[%s0 + $0x128] sm:$0xff]
  %v53 = vld [vmem:[%s0 + $0x130] sm:$0xff]
  %v54 = vld [vmem:[%s0 + $0x138] sm:$0xff]
  %v55 = vld [vmem:[%s0 + $0x140] sm:$0xff]
  %v56 = vld [vmem:[%s0 + $0x148] sm:$0xff]
  %v57 = vld [vmem:[%s0 + $0x150] sm:$0xff]
  %v58 = vld [vmem:[%s0 + $0x158] sm:$0xff]
  %v59 = vld [vmem:[%s0 + $0x160] sm:$0xff]
  %v60 = vld [vmem:[%s0 + $0x168] sm:$0xff]
  %v61 = vld [vmem:[%s0 + $0x170] sm:$0xff]
  %v62 = vld [vmem:[%s0 + $0x178] sm:$0xff]
  %v63 = vld [vmem:[%s0 + $0x180] sm:$0xff]
  %v64 = vld [vmem:[%s0 + $0x188] sm:$0xff]
  %v65 = vld [vmem:[%s0 + $0x190] sm:$0xff]
  %v66 = vld [vmem:[%s0 + $0x198] sm:$0xff]
  %v67 = vld [vmem:[%s0 + $0x1a0] sm:$0xff]
  %v68 = vld [vmem:[%s0 + $0x1a8] sm:$0xff]
  %v69 = vld [vmem:[%s0 + $0x1b0] sm:$0xff]
  %v70 = vld [vmem:[%s0 + $0x1b8] sm:$0xff]
  %v71 = vld [vmem:[%s0 + $0x1c0] sm:$0xff]
  %v72 = vld [vmem:[%s0 + $0x1c8] sm:$0xff]
  %v73 = vld [vmem:[%s0 + $0x1d0] sm:$0xff]
  %v74 = vld [vmem:[%s0 + $0x1d8] sm:$0xff]
  %v75 = vld [vmem:[%s0 + $0x1e0] sm:$0xff]
  %v76 = vld [vmem:[%s0 + $0x1e8] sm:$0xff]
  %v77 = vld [vmem:[%s0 + $0x1f0] sm:$0xff]
  %v78 = vld [vmem:[%s0 + $0x1f8] sm:$0xff]
  %v79 = vld [vmem:[%s0 + $0x200] sm:$0xff]
  %v80 = vld [vmem:[%s0 + $0x208] sm:$0xff]
  %v81 = vld [vmem:[%s0 + $0x210] sm:$0xff]
  %v82 = vld [vmem:[%s0 + $0x218] sm:$0xff]
  %v83 = vld [vmem:[%s0 + $0x220] sm:$0xff]
  %v84 = vld [vmem:[%s0 + $0x228] sm:$0xff]
  %v85 = vld [vmem:[%s0 + $0x230] sm:$0xff]
  %v86 = vld [vmem:[%s0 + $0x238] sm:$0xff]
  %v87 = vld [vmem:[%s0 + $0x240] sm:$0xff]
  %v88 = vld [vmem:[%s0 + $0x248] sm:$0xff]
  %v89 = vld [vmem:[%s0 + $0x250] sm:$0xff]
  %v90 = vld [vmem:[%s0 + $0x258] sm:$0xff]
  %v91 = vld [vmem:[%s0 + $0x260] sm:$0xff]
  %v92 = vld [vmem:[%s0 + $0x268] sm:$0xff]
  %v93 = vld [vmem:[%s0 + $0x270] sm:$0xff]
  %v94 = vld [vmem:[%s0 + $0x278] sm:$0xff]
  %v95 = vld [vmem:[%s0 + $0x280] sm:$0xff]
  %v96 = vld [vmem:[%s0 + $0x288] sm:$0xff]
  %v97 = vld [vmem:[%s0 + $0x290] sm:$0xff]
  %v98 = vld [vmem:[%s0 + $0x298] sm:$0xff]
  %v99 = vld [vmem:[%s0 + $0x2a0] sm:$0xff]
  %v100 = vld [vmem:[%s0 + $0x2a8] sm:$0xff]
  %v101 = vld [vmem:[%s0 + $0x2b0] sm:$0xff]
  %v102 = vld [vmem:[%s0 + $0x2b8] sm:$0xff]
  %v103 = vld [vmem:[%s0 + $0x2c0] sm:$0xff]
  %v104 = vld [vmem:[%s0 + $0x2c8] sm:$0xff]
  %v105 = vld [vmem:[%s0 + $0x2d0] sm:$0xff]
  %v106 = vld [vmem:[%s0 + $0x2d8] sm:$0xff]
  %v107 = vld [vmem:[%s0 + $0x2e0] sm:$0xff]
  %v108 = vld [vmem:[%s0 + $0x2e8] sm:$0xff]
  %v109 = vld [vmem:[%s0 + $0x2f0] sm:$0xff]
  %v110 = vld [vmem:[%s0 + $0x2f8] sm:$0xff]
  %v111 = vld [vmem:[%s0 + $0x300] sm:$0xff]
  %v112 = vld [vmem:[%s0 + $0x308] sm:$0xff]
  %v113 = vld [vmem:[%s0 + $0x310] sm:$0xff]
  %v114 = vld [vmem:[%s0 + $0x318] sm:$0xff]
  %v115 = vld [vmem:[%s0 + $0x320] sm:$0xff]
  %v116 = vld [vmem:[%s0 + $0x328] sm:$0xff]
  %v117 = vld [vmem:[%s0 + $0x330] sm:$0xff]
  %v118 = vld [vmem:[%s0 + $0x338] sm:$0xff]
  %v119 = vld [vmem:[%s0 + $0x340] sm:$0xff]
  %v120 = vld [vmem:[%s0 + $0x348] sm:$0xff]
  %v121 = vld [vmem:[%s0 + $0x350] sm:$0xff]
  %v122 = vld [vmem:[%s0 + $0x358] sm:$0xff]
  %v123 = vld [vmem:[%s0 + $0x360] sm:$0xff]
  %v124 = vld [vmem:[%s0 + $0x368] sm:$0xff]
  %v125 = vld [vmem:[%s0 + $0x370] sm:$0xff]
  %v126 = vld [vmem:[%s0 + $0x378] sm:$0xff]
  %v127 = vld [vmem:[%s0 + $0x380] sm:$0xff]
  %v128 = vld [vmem:[%s0 + $0x388] sm:$0xff]
  %v129 = vld [vmem:[%s0 + $0x390] sm:$0xff]
  %v130 = vld [vmem:[%s0 + $0x398] sm:$0xff]
  %v131 = vld [vmem:[%s0 + $0x3a0] sm:$0xff]
  %v132 = vld [vmem:[%s0 + $0x3a8] sm:$0xff]
  %v133 = vld [vmem:[%s0 + $0x3b0] sm:$0xff]
  %v134 = vld [vmem:[%s0 + $0x3b8] sm:$0xff]
  %v135 = vpack.c.bf16 %v39, %v15
  %v136 = vpack.c.bf16 %v40, %v16
  %v137 = vpack.c.bf16 %v41, %v17
  %v138 = vpack.c.bf16 %v42, %v18
  %v139 = vpack.c.bf16 %v43, %v19
  %v140 = vpack.c.bf16 %v44, %v20
  %v141 = vpack.c.bf16 %v45, %v21
  %v142 = vpack.c.bf16 %v46, %v22
  %v143 = vpack.c.bf16 %v47, %v23
  %v144 = vpack.c.bf16 %v48, %v24
  %v145 = vpack.c.bf16 %v49, %v25
  %v146 = vpack.c.bf16 %v50, %v26
  %v147 = vpack.c.bf16 %v51, %v27
  %v148 = vpack.c.bf16 %v52, %v28
  %v149 = vpack.c.bf16 %v53, %v29
  %v150 = vpack.c.bf16 %v54, %v30
  %v151 = vpack.c.bf16 %v55, %v31
  %v152 = vpack.c.bf16 %v56, %v32
  %v153 = vpack.c.bf16 %v57, %v33
  %v154 = vpack.c.bf16 %v58, %v34
  %v155 = vpack.c.bf16 %v59, %v35
  %v156 = vpack.c.bf16 %v60, %v36
  %v157 = vpack.c.bf16 %v61, %v37
  %v158 = vpack.c.bf16 %v62, %v38
  %v159 = vpack.c.bf16 %v87, %v63
  %v160 = vpack.c.bf16 %v88, %v64
  %v161 = vpack.c.bf16 %v89, %v65
  %v162 = vpack.c.bf16 %v90, %v66
  %v163 = vpack.c.bf16 %v91, %v67
  %v164 = vpack.c.bf16 %v92, %v68
  %v165 = vpack.c.bf16 %v93, %v69
  %v166 = vpack.c.bf16 %v94, %v70
  %v167 = vpack.c.bf16 %v95, %v71
  %v168 = vpack.c.bf16 %v96, %v72
  %v169 = vpack.c.bf16 %v97, %v73
  %v170 = vpack.c.bf16 %v98, %v74
  %v171 = vpack.c.bf16 %v99, %v75
  %v172 = vpack.c.bf16 %v100, %v76
  %v173 = vpack.c.bf16 %v101, %v77
  %v174 = vpack.c.bf16 %v102, %v78
  %v175 = vpack.c.bf16 %v103, %v79
  %v176 = vpack.c.bf16 %v104, %v80
  %v177 = vpack.c.bf16 %v105, %v81
  %v178 = vpack.c.bf16 %v106, %v82
  %v179 = vpack.c.bf16 %v107, %v83
  %v180 = vpack.c.bf16 %v108, %v84
  %v181 = vpack.c.bf16 %v109, %v85
  %v182 = vpack.c.bf16 %v110, %v86
  %v183 = vpack.c.bf16 %v111, %v111
  %v184 = vpack.c.bf16 %v112, %v112
  %v185 = vpack.c.bf16 %v113, %v113
  %v186 = vpack.c.bf16 %v114, %v114
  %v187 = vpack.c.bf16 %v115, %v115
  %v188 = vpack.c.bf16 %v116, %v116
  %v189 = vpack.c.bf16 %v117, %v117
  %v190 = vpack.c.bf16 %v118, %v118
  %v191 = vpack.c.bf16 %v119, %v119
  %v192 = vpack.c.bf16 %v120, %v120
  %v193 = vpack.c.bf16 %v121, %v121
  %v194 = vpack.c.bf16 %v122, %v122
  %v195 = vpack.c.bf16 %v123, %v123
  %v196 = vpack.c.bf16 %v124, %v124
  %v197 = vpack.c.bf16 %v125, %v125
  %v198 = vpack.c.bf16 %v126, %v126
  %v199 = vpack.c.bf16 %v127, %v127
  %v200 = vpack.c.bf16 %v128, %v128
  %v201 = vpack.c.bf16 %v129, %v129
  %v202 = vpack.c.bf16 %v130, %v130
  %v203 = vpack.c.bf16 %v131, %v131
  %v204 = vpack.c.bf16 %v132, %v132
  %v205 = vpack.c.bf16 %v133, %v133
  %v206 = vpack.c.bf16 %v134, %v134
  %v207 = vld [vmem:[%s1] sm:$0xf]
  %v208 = vld [vmem:[%s1 + $0x4] sm:$0xf]
  %v209 = vld [vmem:[%s1 + $0x8] sm:$0xf]
  %v210 = vld [vmem:[%s1 + $0xc] sm:$0xf]
  %v211 = vld [vmem:[%s1 + $0x10] sm:$0xf]
  %v212 = vld [vmem:[%s1 + $0x14] sm:$0xf]
  %v213 = vld [vmem:[%s1 + $0x18] sm:$0xf]
  %v214 = vld [vmem:[%s1 + $0x1c] sm:$0xf]
  %v215 = vld [vmem:[%s1 + $0x20] sm:$0xf]
  %v216 = vld [vmem:[%s1 + $0x24] sm:$0xf]
  %v217 = vld [vmem:[%s1 + $0x28] sm:$0xf]
  %v218 = vld [vmem:[%s1 + $0x2c] sm:$0xf]
  %v219 = vld [vmem:[%s1 + $0x30] sm:$0xf]
  %v220 = vld [vmem:[%s1 + $0x34] sm:$0xf]
  %v221 = vld [vmem:[%s1 + $0x38] sm:$0xf]
  %v222 = vld [vmem:[%s1 + $0x3c] sm:$0xf]
  %v223 = vld [vmem:[%s1 + $0x40] sm:$0xf]
  %v224 = vld [vmem:[%s1 + $0x44] sm:$0xf]
  %v225 = vld [vmem:[%s1 + $0x48] sm:$0xf]
  %v226 = vld [vmem:[%s1 + $0x4c] sm:$0xf]
  %v227 = vld [vmem:[%s1 + $0x50] sm:$0xf]
  %v228 = vld [vmem:[%s1 + $0x54] sm:$0xf]
  %v229 = vld [vmem:[%s1 + $0x58] sm:$0xf]
  %v230 = vld [vmem:[%s1 + $0x5c] sm:$0xf]
  %v231 = vld [vmem:[%s1 + $0x60] sm:$0xf]
  %v232 = vld [vmem:[%s1 + $0x64] sm:$0xf]
  %v233 = vld [vmem:[%s1 + $0x68] sm:$0xf]
  %v234 = vld [vmem:[%s1 + $0x6c] sm:$0xf]
  %v235 = vld [vmem:[%s1 + $0x70] sm:$0xf]
  %v236 = vld [vmem:[%s1 + $0x74] sm:$0xf]
  %v237 = vld [vmem:[%s1 + $0x78] sm:$0xf]
  %v238 = vld [vmem:[%s1 + $0x7c] sm:$0xf]
  %v239 = vld [vmem:[%s1 + $0x80] sm:$0xf]
  %v240 = vld [vmem:[%s1 + $0x84] sm:$0xf]
  %v241 = vld [vmem:[%s1 + $0x88] sm:$0xf]
  %v242 = vld [vmem:[%s1 + $0x8c] sm:$0xf]
  %v243 = vld [vmem:[%s1 + $0x90] sm:$0xf]
  %v244 = vld [vmem:[%s1 + $0x94] sm:$0xf]
  %v245 = vld [vmem:[%s1 + $0x98] sm:$0xf]
  %v246 = vld [vmem:[%s1 + $0x9c] sm:$0xf]
  %v247 = vld [vmem:[%s1 + $0xa0] sm:$0xf]
  %v248 = vld [vmem:[%s1 + $0xa4] sm:$0xf]
  %v249 = vld [vmem:[%s1 + $0xa8] sm:$0xf]
  %v250 = vld [vmem:[%s1 + $0xac] sm:$0xf]
  %v251 = vld [vmem:[%s1 + $0xb0] sm:$0xf]
  %v252 = vld [vmem:[%s1 + $0xb4] sm:$0xf]
  %v253 = vld [vmem:[%s1 + $0xb8] sm:$0xf]
  %v254 = vld [vmem:[%s1 + $0xbc] sm:$0xf]
  %v255 = vld [vmem:[%s1 + $0xc0] sm:$0xf]
  %v256 = vld [vmem:[%s1 + $0xc4] sm:$0xf]
  %v257 = vld [vmem:[%s1 + $0xc8] sm:$0xf]
  %v258 = vld [vmem:[%s1 + $0xcc] sm:$0xf]
  %v259 = vld [vmem:[%s1 + $0xd0] sm:$0xf]
  %v260 = vld [vmem:[%s1 + $0xd4] sm:$0xf]
  %v261 = vld [vmem:[%s1 + $0xd8] sm:$0xf]
  %v262 = vld [vmem:[%s1 + $0xdc] sm:$0xf]
  %v263 = vld [vmem:[%s1 + $0xe0] sm:$0xf]
  %v264 = vld [vmem:[%s1 + $0xe4] sm:$0xf]
  %v265 = vld [vmem:[%s1 + $0xe8] sm:$0xf]
  %v266 = vld [vmem:[%s1 + $0xec] sm:$0xf]
  %v267 = vld [vmem:[%s1 + $0xf0] sm:$0xf]
  %v268 = vld [vmem:[%s1 + $0xf4] sm:$0xf]
  %v269 = vld [vmem:[%s1 + $0xf8] sm:$0xf]
  %v270 = vld [vmem:[%s1 + $0xfc] sm:$0xf]
  %v271 = vld [vmem:[%s1 + $0x100] sm:$0xf]
  %v272 = vld [vmem:[%s1 + $0x104] sm:$0xf]
  %v273 = vld [vmem:[%s1 + $0x108] sm:$0xf]
  %v274 = vld [vmem:[%s1 + $0x10c] sm:$0xf]
  %v275 = vld [vmem:[%s1 + $0x110] sm:$0xf]
  %v276 = vld [vmem:[%s1 + $0x114] sm:$0xf]
  %v277 = vld [vmem:[%s1 + $0x118] sm:$0xf]
  %v278 = vld [vmem:[%s1 + $0x11c] sm:$0xf]
  %v279 = vld [vmem:[%s1 + $0x120] sm:$0xf]
  %v280 = vld [vmem:[%s1 + $0x124] sm:$0xf]
  %v281 = vld [vmem:[%s1 + $0x128] sm:$0xf]
  %v282 = vld [vmem:[%s1 + $0x12c] sm:$0xf]
  %v283 = vld [vmem:[%s1 + $0x130] sm:$0xf]
  %v284 = vld [vmem:[%s1 + $0x134] sm:$0xf]
  %v285 = vld [vmem:[%s1 + $0x138] sm:$0xf]
  %v286 = vld [vmem:[%s1 + $0x13c] sm:$0xf]
  %v287 = vld [vmem:[%s1 + $0x140] sm:$0xf]
  %v288 = vld [vmem:[%s1 + $0x144] sm:$0xf]
  %v289 = vld [vmem:[%s1 + $0x148] sm:$0xf]
  %v290 = vld [vmem:[%s1 + $0x14c] sm:$0xf]
  %v291 = vld [vmem:[%s1 + $0x150] sm:$0xf]
  %v292 = vld [vmem:[%s1 + $0x154] sm:$0xf]
  %v293 = vld [vmem:[%s1 + $0x158] sm:$0xf]
  %v294 = vld [vmem:[%s1 + $0x15c] sm:$0xf]
  %v295 = vld [vmem:[%s1 + $0x160] sm:$0xf]
  %v296 = vld [vmem:[%s1 + $0x164] sm:$0xf]
  %v297 = vld [vmem:[%s1 + $0x168] sm:$0xf]
  %v298 = vld [vmem:[%s1 + $0x16c] sm:$0xf]
  %v299 = vld [vmem:[%s1 + $0x170] sm:$0xf]
  %v300 = vld [vmem:[%s1 + $0x174] sm:$0xf]
  %v301 = vld [vmem:[%s1 + $0x178] sm:$0xf]
  %v302 = vld [vmem:[%s1 + $0x17c] sm:$0xf]
  %v303 = vld [vmem:[%s1 + $0x180] sm:$0xf]
  %v304 = vld [vmem:[%s1 + $0x184] sm:$0xf]
  %v305 = vld [vmem:[%s1 + $0x188] sm:$0xf]
  %v306 = vld [vmem:[%s1 + $0x18c] sm:$0xf]
  %v307 = vld [vmem:[%s1 + $0x190] sm:$0xf]
  %v308 = vld [vmem:[%s1 + $0x194] sm:$0xf]
  %v309 = vld [vmem:[%s1 + $0x198] sm:$0xf]
  %v310 = vld [vmem:[%s1 + $0x19c] sm:$0xf]
  %v311 = vld [vmem:[%s1 + $0x1a0] sm:$0xf]
  %v312 = vld [vmem:[%s1 + $0x1a4] sm:$0xf]
  %v313 = vld [vmem:[%s1 + $0x1a8] sm:$0xf]
  %v314 = vld [vmem:[%s1 + $0x1ac] sm:$0xf]
  %v315 = vld [vmem:[%s1 + $0x1b0] sm:$0xf]
  %v316 = vld [vmem:[%s1 + $0x1b4] sm:$0xf]
  %v317 = vld [vmem:[%s1 + $0x1b8] sm:$0xf]
  %v318 = vld [vmem:[%s1 + $0x1bc] sm:$0xf]
  %v319 = vld [vmem:[%s1 + $0x1c0] sm:$0xf]
  %v320 = vld [vmem:[%s1 + $0x1c4] sm:$0xf]
  %v321 = vld [vmem:[%s1 + $0x1c8] sm:$0xf]
  %v322 = vld [vmem:[%s1 + $0x1cc] sm:$0xf]
  %v323 = vld [vmem:[%s1 + $0x1d0] sm:$0xf]
  %v324 = vld [vmem:[%s1 + $0x1d4] sm:$0xf]
  %v325 = vld [vmem:[%s1 + $0x1d8] sm:$0xf]
  %v326 = vld [vmem:[%s1 + $0x1dc] sm:$0xf]
  %v327 = vld [vmem:[%s1 + $0x1e0] sm:$0xf]
  %v328 = vld [vmem:[%s1 + $0x1e4] sm:$0xf]
  %v329 = vld [vmem:[%s1 + $0x1e8] sm:$0xf]
  %v330 = vld [vmem:[%s1 + $0x1ec] sm:$0xf]
  %v331 = vld [vmem:[%s1 + $0x1f0] sm:$0xf]
  %v332 = vld [vmem:[%s1 + $0x1f4] sm:$0xf]
  %v333 = vld [vmem:[%s1 + $0x1f8] sm:$0xf]
  %v334 = vld [vmem:[%s1 + $0x1fc] sm:$0xf]
  %v335 = vld [vmem:[%s1 + $0x200] sm:$0xf]
  %v336 = vld [vmem:[%s1 + $0x204] sm:$0xf]
  %v337 = vld [vmem:[%s1 + $0x208] sm:$0xf]
  %v338 = vld [vmem:[%s1 + $0x20c] sm:$0xf]
  %v339 = vld [vmem:[%s1 + $0x210] sm:$0xf]
  %v340 = vld [vmem:[%s1 + $0x214] sm:$0xf]
  %v341 = vld [vmem:[%s1 + $0x218] sm:$0xf]
  %v342 = vld [vmem:[%s1 + $0x21c] sm:$0xf]
  %v343 = vld [vmem:[%s1 + $0x220] sm:$0xf]
  %v344 = vld [vmem:[%s1 + $0x224] sm:$0xf]
  %v345 = vld [vmem:[%s1 + $0x228] sm:$0xf]
  %v346 = vld [vmem:[%s1 + $0x22c] sm:$0xf]
  %v347 = vld [vmem:[%s1 + $0x230] sm:$0xf]
  %v348 = vld [vmem:[%s1 + $0x234] sm:$0xf]
  %v349 = vld [vmem:[%s1 + $0x238] sm:$0xf]
  %v350 = vld [vmem:[%s1 + $0x23c] sm:$0xf]
  %v351 = vld [vmem:[%s1 + $0x240] sm:$0xf]
  %v352 = vld [vmem:[%s1 + $0x244] sm:$0xf]
  %v353 = vld [vmem:[%s1 + $0x248] sm:$0xf]
  %v354 = vld [vmem:[%s1 + $0x24c] sm:$0xf]
  %v355 = vld [vmem:[%s1 + $0x250] sm:$0xf]
  %v356 = vld [vmem:[%s1 + $0x254] sm:$0xf]
  %v357 = vld [vmem:[%s1 + $0x258] sm:$0xf]
  %v358 = vld [vmem:[%s1 + $0x25c] sm:$0xf]
  %v359 = vld [vmem:[%s1 + $0x260] sm:$0xf]
  %v360 = vld [vmem:[%s1 + $0x264] sm:$0xf]
  %v361 = vld [vmem:[%s1 + $0x268] sm:$0xf]
  %v362 = vld [vmem:[%s1 + $0x26c] sm:$0xf]
  %v363 = vld [vmem:[%s1 + $0x270] sm:$0xf]
  %v364 = vld [vmem:[%s1 + $0x274] sm:$0xf]
  %v365 = vld [vmem:[%s1 + $0x278] sm:$0xf]
  %v366 = vld [vmem:[%s1 + $0x27c] sm:$0xf]
  %v367 = vld [vmem:[%s1 + $0x280] sm:$0xf]
  %v368 = vld [vmem:[%s1 + $0x284] sm:$0xf]
  %v369 = vld [vmem:[%s1 + $0x288] sm:$0xf]
  %v370 = vld [vmem:[%s1 + $0x28c] sm:$0xf]
  %v371 = vld [vmem:[%s1 + $0x290] sm:$0xf]
  %v372 = vld [vmem:[%s1 + $0x294] sm:$0xf]
  %v373 = vld [vmem:[%s1 + $0x298] sm:$0xf]
  %v374 = vld [vmem:[%s1 + $0x29c] sm:$0xf]
  %v375 = vld [vmem:[%s1 + $0x2a0] sm:$0xf]
  %v376 = vld [vmem:[%s1 + $0x2a4] sm:$0xf]
  %v377 = vld [vmem:[%s1 + $0x2a8] sm:$0xf]
  %v378 = vld [vmem:[%s1 + $0x2ac] sm:$0xf]
  %v379 = vld [vmem:[%s1 + $0x2b0] sm:$0xf]
  %v380 = vld [vmem:[%s1 + $0x2b4] sm:$0xf]
  %v381 = vld [vmem:[%s1 + $0x2b8] sm:$0xf]
  %v382 = vld [vmem:[%s1 + $0x2bc] sm:$0xf]
  %v383 = vld [vmem:[%s1 + $0x2c0] sm:$0xf]
  %v384 = vld [vmem:[%s1 + $0x2c4] sm:$0xf]
  %v385 = vld [vmem:[%s1 + $0x2c8] sm:$0xf]
  %v386 = vld [vmem:[%s1 + $0x2cc] sm:$0xf]
  %v387 = vld [vmem:[%s1 + $0x2d0] sm:$0xf]
  %v388 = vld [vmem:[%s1 + $0x2d4] sm:$0xf]
  %v389 = vld [vmem:[%s1 + $0x2d8] sm:$0xf]
  %v390 = vld [vmem:[%s1 + $0x2dc] sm:$0xf]
  %v391 = vld [vmem:[%s1 + $0x2e0] sm:$0xf]
  %v392 = vld [vmem:[%s1 + $0x2e4] sm:$0xf]
  %v393 = vld [vmem:[%s1 + $0x2e8] sm:$0xf]
  %v394 = vld [vmem:[%s1 + $0x2ec] sm:$0xf]
  %v395 = vld [vmem:[%s1 + $0x2f0] sm:$0xf]
  %v396 = vld [vmem:[%s1 + $0x2f4] sm:$0xf]
  %v397 = vld [vmem:[%s1 + $0x2f8] sm:$0xf]
  %v398 = vld [vmem:[%s1 + $0x2fc] sm:$0xf]
  %v399 = vld [vmem:[%s1 + $0x300] sm:$0xf]
  %v400 = vld [vmem:[%s1 + $0x304] sm:$0xf]
  %v401 = vld [vmem:[%s1 + $0x308] sm:$0xf]
  %v402 = vld [vmem:[%s1 + $0x30c] sm:$0xf]
  %v403 = vld [vmem:[%s1 + $0x310] sm:$0xf]
  %v404 = vld [vmem:[%s1 + $0x314] sm:$0xf]
  %v405 = vld [vmem:[%s1 + $0x318] sm:$0xf]
  %v406 = vld [vmem:[%s1 + $0x31c] sm:$0xf]
  %v407 = vld [vmem:[%s1 + $0x320] sm:$0xf]
  %v408 = vld [vmem:[%s1 + $0x324] sm:$0xf]
  %v409 = vld [vmem:[%s1 + $0x328] sm:$0xf]
  %v410 = vld [vmem:[%s1 + $0x32c] sm:$0xf]
  %v411 = vld [vmem:[%s1 + $0x330] sm:$0xf]
  %v412 = vld [vmem:[%s1 + $0x334] sm:$0xf]
  %v413 = vld [vmem:[%s1 + $0x338] sm:$0xf]
  %v414 = vld [vmem:[%s1 + $0x33c] sm:$0xf]
  %v415 = vld [vmem:[%s1 + $0x340] sm:$0xf]
  %v416 = vld [vmem:[%s1 + $0x344] sm:$0xf]
  %v417 = vld [vmem:[%s1 + $0x348] sm:$0xf]
  %v418 = vld [vmem:[%s1 + $0x34c] sm:$0xf]
  %v419 = vld [vmem:[%s1 + $0x350] sm:$0xf]
  %v420 = vld [vmem:[%s1 + $0x354] sm:$0xf]
  %v421 = vld [vmem:[%s1 + $0x358] sm:$0xf]
  %v422 = vld [vmem:[%s1 + $0x35c] sm:$0xf]
  %v423 = vld [vmem:[%s1 + $0x360] sm:$0xf]
  %v424 = vld [vmem:[%s1 + $0x364] sm:$0xf]
  %v425 = vld [vmem:[%s1 + $0x368] sm:$0xf]
  %v426 = vld [vmem:[%s1 + $0x36c] sm:$0xf]
  %v427 = vld [vmem:[%s1 + $0x370] sm:$0xf]
  %v428 = vld [vmem:[%s1 + $0x374] sm:$0xf]
  %v429 = vld [vmem:[%s1 + $0x378] sm:$0xf]
  %v430 = vld [vmem:[%s1 + $0x37c] sm:$0xf]
  %v431 = vld [vmem:[%s1 + $0x380] sm:$0xf]
  %v432 = vld [vmem:[%s1 + $0x384] sm:$0xf]
  %v433 = vld [vmem:[%s1 + $0x388] sm:$0xf]
  %v434 = vld [vmem:[%s1 + $0x38c] sm:$0xf]
  %v435 = vld [vmem:[%s1 + $0x390] sm:$0xf]
  %v436 = vld [vmem:[%s1 + $0x394] sm:$0xf]
  %v437 = vld [vmem:[%s1 + $0x398] sm:$0xf]
  %v438 = vld [vmem:[%s1 + $0x39c] sm:$0xf]
  %v439 = vld [vmem:[%s1 + $0x3a0] sm:$0xf]
  %v440 = vld [vmem:[%s1 + $0x3a4] sm:$0xf]
  %v441 = vld [vmem:[%s1 + $0x3a8] sm:$0xf]
  %v442 = vld [vmem:[%s1 + $0x3ac] sm:$0xf]
  %v443 = vld [vmem:[%s1 + $0x3b0] sm:$0xf]
  %v444 = vld [vmem:[%s1 + $0x3b4] sm:$0xf]
  %v445 = vld [vmem:[%s1 + $0x3b8] sm:$0xf]
  %v446 = vld [vmem:[%s1 + $0x3bc] sm:$0xf]
  %v447 = vld [vmem:[%s1 + $0x3c0] sm:$0xf]
  %v448 = vld [vmem:[%s1 + $0x3c4] sm:$0xf]
  %v449 = vld [vmem:[%s1 + $0x3c8] sm:$0xf]
  %v450 = vld [vmem:[%s1 + $0x3cc] sm:$0xf]
  %v451 = vld [vmem:[%s1 + $0x3d0] sm:$0xf]
  %v452 = vld [vmem:[%s1 + $0x3d4] sm:$0xf]
  %v453 = vld [vmem:[%s1 + $0x3d8] sm:$0xf]
  %v454 = vld [vmem:[%s1 + $0x3dc] sm:$0xf]
  %v455 = vld [vmem:[%s1 + $0x3e0] sm:$0xf]
  %v456 = vld [vmem:[%s1 + $0x3e4] sm:$0xf]
  %v457 = vld [vmem:[%s1 + $0x3e8] sm:$0xf]
  %v458 = vld [vmem:[%s1 + $0x3ec] sm:$0xf]
  %v459 = vld [vmem:[%s1 + $0x3f0] sm:$0xf]
  %v460 = vld [vmem:[%s1 + $0x3f4] sm:$0xf]
  %v461 = vld [vmem:[%s1 + $0x3f8] sm:$0xf]
  %v462 = vld [vmem:[%s1 + $0x3fc] sm:$0xf]
  %v463 = vld [vmem:[%s1 + $0x400] sm:$0xf]
  %v464 = vld [vmem:[%s1 + $0x404] sm:$0xf]
  %v465 = vld [vmem:[%s1 + $0x408] sm:$0xf]
  %v466 = vld [vmem:[%s1 + $0x40c] sm:$0xf]
  %v467 = vld [vmem:[%s1 + $0x410] sm:$0xf]
  %v468 = vld [vmem:[%s1 + $0x414] sm:$0xf]
  %v469 = vld [vmem:[%s1 + $0x418] sm:$0xf]
  %v470 = vld [vmem:[%s1 + $0x41c] sm:$0xf]
  %v471 = vld [vmem:[%s1 + $0x420] sm:$0xf]
  %v472 = vld [vmem:[%s1 + $0x424] sm:$0xf]
  %v473 = vld [vmem:[%s1 + $0x428] sm:$0xf]
  %v474 = vld [vmem:[%s1 + $0x42c] sm:$0xf]
  %v475 = vld [vmem:[%s1 + $0x430] sm:$0xf]
  %v476 = vld [vmem:[%s1 + $0x434] sm:$0xf]
  %v477 = vld [vmem:[%s1 + $0x438] sm:$0xf]
  %v478 = vld [vmem:[%s1 + $0x43c] sm:$0xf]
  %v479 = vld [vmem:[%s1 + $0x440] sm:$0xf]
  %v480 = vld [vmem:[%s1 + $0x444] sm:$0xf]
  %v481 = vld [vmem:[%s1 + $0x448] sm:$0xf]
  %v482 = vld [vmem:[%s1 + $0x44c] sm:$0xf]
  %v483 = vld [vmem:[%s1 + $0x450] sm:$0xf]
  %v484 = vld [vmem:[%s1 + $0x454] sm:$0xf]
  %v485 = vld [vmem:[%s1 + $0x458] sm:$0xf]
  %v486 = vld [vmem:[%s1 + $0x45c] sm:$0xf]
  %v487 = vld [vmem:[%s1 + $0x460] sm:$0xf]
  %v488 = vld [vmem:[%s1 + $0x464] sm:$0xf]
  %v489 = vld [vmem:[%s1 + $0x468] sm:$0xf]
  %v490 = vld [vmem:[%s1 + $0x46c] sm:$0xf]
  %v491 = vld [vmem:[%s1 + $0x470] sm:$0xf]
  %v492 = vld [vmem:[%s1 + $0x474] sm:$0xf]
  %v493 = vld [vmem:[%s1 + $0x478] sm:$0xf]
  %v494 = vld [vmem:[%s1 + $0x47c] sm:$0xf]
  %v495 = vld [vmem:[%s1 + $0x480] sm:$0xf]
  %v496 = vld [vmem:[%s1 + $0x484] sm:$0xf]
  %v497 = vld [vmem:[%s1 + $0x488] sm:$0xf]
  %v498 = vld [vmem:[%s1 + $0x48c] sm:$0xf]
  %v499 = vld [vmem:[%s1 + $0x490] sm:$0xf]
  %v500 = vld [vmem:[%s1 + $0x494] sm:$0xf]
  %v501 = vld [vmem:[%s1 + $0x498] sm:$0xf]
  %v502 = vld [vmem:[%s1 + $0x49c] sm:$0xf]
  %v503 = vld [vmem:[%s1 + $0x4a0] sm:$0xf]
  %v504 = vld [vmem:[%s1 + $0x4a4] sm:$0xf]
  %v505 = vld [vmem:[%s1 + $0x4a8] sm:$0xf]
  %v506 = vld [vmem:[%s1 + $0x4ac] sm:$0xf]
  %v507 = vld [vmem:[%s1 + $0x4b0] sm:$0xf]
  %v508 = vld [vmem:[%s1 + $0x4b4] sm:$0xf]
  %v509 = vld [vmem:[%s1 + $0x4b8] sm:$0xf]
  %v510 = vld [vmem:[%s1 + $0x4bc] sm:$0xf]
  %v511 = vld [vmem:[%s1 + $0x4c0] sm:$0xf]
  %v512 = vld [vmem:[%s1 + $0x4c4] sm:$0xf]
  %v513 = vld [vmem:[%s1 + $0x4c8] sm:$0xf]
  %v514 = vld [vmem:[%s1 + $0x4cc] sm:$0xf]
  %v515 = vld [vmem:[%s1 + $0x4d0] sm:$0xf]
  %v516 = vld [vmem:[%s1 + $0x4d4] sm:$0xf]
  %v517 = vld [vmem:[%s1 + $0x4d8] sm:$0xf]
  %v518 = vld [vmem:[%s1 + $0x4dc] sm:$0xf]
  %v519 = vld [vmem:[%s1 + $0x4e0] sm:$0xf]
  %v520 = vld [vmem:[%s1 + $0x4e4] sm:$0xf]
  %v521 = vld [vmem:[%s1 + $0x4e8] sm:$0xf]
  %v522 = vld [vmem:[%s1 + $0x4ec] sm:$0xf]
  %v523 = vld [vmem:[%s1 + $0x4f0] sm:$0xf]
  %v524 = vld [vmem:[%s1 + $0x4f4] sm:$0xf]
  %v525 = vld [vmem:[%s1 + $0x4f8] sm:$0xf]
  %v526 = vld [vmem:[%s1 + $0x4fc] sm:$0xf]
  %v527 = vld [vmem:[%s1 + $0x500] sm:$0xf]
  %v528 = vld [vmem:[%s1 + $0x504] sm:$0xf]
  %v529 = vld [vmem:[%s1 + $0x508] sm:$0xf]
  %v530 = vld [vmem:[%s1 + $0x50c] sm:$0xf]
  %v531 = vld [vmem:[%s1 + $0x510] sm:$0xf]
  %v532 = vld [vmem:[%s1 + $0x514] sm:$0xf]
  %v533 = vld [vmem:[%s1 + $0x518] sm:$0xf]
  %v534 = vld [vmem:[%s1 + $0x51c] sm:$0xf]
  %v535 = vld [vmem:[%s1 + $0x520] sm:$0xf]
  %v536 = vld [vmem:[%s1 + $0x524] sm:$0xf]
  %v537 = vld [vmem:[%s1 + $0x528] sm:$0xf]
  %v538 = vld [vmem:[%s1 + $0x52c] sm:$0xf]
  %v539 = vld [vmem:[%s1 + $0x530] sm:$0xf]
  %v540 = vld [vmem:[%s1 + $0x534] sm:$0xf]
  %v541 = vld [vmem:[%s1 + $0x538] sm:$0xf]
  %v542 = vld [vmem:[%s1 + $0x53c] sm:$0xf]
  %v543 = vld [vmem:[%s1 + $0x540] sm:$0xf]
  %v544 = vld [vmem:[%s1 + $0x544] sm:$0xf]
  %v545 = vld [vmem:[%s1 + $0x548] sm:$0xf]
  %v546 = vld [vmem:[%s1 + $0x54c] sm:$0xf]
  %v547 = vld [vmem:[%s1 + $0x550] sm:$0xf]
  %v548 = vld [vmem:[%s1 + $0x554] sm:$0xf]
  %v549 = vld [vmem:[%s1 + $0x558] sm:$0xf]
  %v550 = vld [vmem:[%s1 + $0x55c] sm:$0xf]
  %v551 = vld [vmem:[%s1 + $0x560] sm:$0xf]
  %v552 = vld [vmem:[%s1 + $0x564] sm:$0xf]
  %v553 = vld [vmem:[%s1 + $0x568] sm:$0xf]
  %v554 = vld [vmem:[%s1 + $0x56c] sm:$0xf]
  %v555 = vld [vmem:[%s1 + $0x570] sm:$0xf]
  %v556 = vld [vmem:[%s1 + $0x574] sm:$0xf]
  %v557 = vld [vmem:[%s1 + $0x578] sm:$0xf]
  %v558 = vld [vmem:[%s1 + $0x57c] sm:$0xf]
  %v559 = vld [vmem:[%s1 + $0x580] sm:$0xf]
  %v560 = vld [vmem:[%s1 + $0x584] sm:$0xf]
  %v561 = vld [vmem:[%s1 + $0x588] sm:$0xf]
  %v562 = vld [vmem:[%s1 + $0x58c] sm:$0xf]
  %v563 = vld [vmem:[%s1 + $0x590] sm:$0xf]
  %v564 = vld [vmem:[%s1 + $0x594] sm:$0xf]
  %v565 = vld [vmem:[%s1 + $0x598] sm:$0xf]
  %v566 = vld [vmem:[%s1 + $0x59c] sm:$0xf]
  %v567 = vld [vmem:[%s1 + $0x5a0] sm:$0xf]
  %v568 = vld [vmem:[%s1 + $0x5a4] sm:$0xf]
  %v569 = vld [vmem:[%s1 + $0x5a8] sm:$0xf]
  %v570 = vld [vmem:[%s1 + $0x5ac] sm:$0xf]
  %v571 = vld [vmem:[%s1 + $0x5b0] sm:$0xf]
  %v572 = vld [vmem:[%s1 + $0x5b4] sm:$0xf]
  %v573 = vld [vmem:[%s1 + $0x5b8] sm:$0xf]
  %v574 = vld [vmem:[%s1 + $0x5bc] sm:$0xf]
  %v575 = vld [vmem:[%s1 + $0x5c0] sm:$0xf]
  %v576 = vld [vmem:[%s1 + $0x5c4] sm:$0xf]
  %v577 = vld [vmem:[%s1 + $0x5c8] sm:$0xf]
  %v578 = vld [vmem:[%s1 + $0x5cc] sm:$0xf]
  %v579 = vld [vmem:[%s1 + $0x5d0] sm:$0xf]
  %v580 = vld [vmem:[%s1 + $0x5d4] sm:$0xf]
  %v581 = vld [vmem:[%s1 + $0x5d8] sm:$0xf]
  %v582 = vld [vmem:[%s1 + $0x5dc] sm:$0xf]
  %v583 = vld [vmem:[%s1 + $0x5e0] sm:$0xf]
  %v584 = vld [vmem:[%s1 + $0x5e4] sm:$0xf]
  %v585 = vld [vmem:[%s1 + $0x5e8] sm:$0xf]
  %v586 = vld [vmem:[%s1 + $0x5ec] sm:$0xf]
  %v587 = vld [vmem:[%s1 + $0x5f0] sm:$0xf]
  %v588 = vld [vmem:[%s1 + $0x5f4] sm:$0xf]
  %v589 = vld [vmem:[%s1 + $0x5f8] sm:$0xf]
  %v590 = vld [vmem:[%s1 + $0x5fc] sm:$0xf]
  %v975 = vunpack.c.l.b16 %v207
  %v976 = vunpack.c.l.b16 %v208
  %v977 = vunpack.c.l.b16 %v209
  %v978 = vunpack.c.l.b16 %v210
  %v979 = vunpack.c.l.b16 %v211
  %v980 = vunpack.c.l.b16 %v212
  %v981 = vunpack.c.l.b16 %v213
  %v982 = vunpack.c.l.b16 %v214
  %v983 = vunpack.c.l.b16 %v215
  %v984 = vunpack.c.l.b16 %v216
  %v985 = vunpack.c.l.b16 %v217
  %v986 = vunpack.c.l.b16 %v218
  %v987 = vunpack.c.l.b16 %v219
  %v988 = vunpack.c.l.b16 %v220
  %v989 = vunpack.c.l.b16 %v221
  %v990 = vunpack.c.l.b16 %v222
  %v991 = vunpack.c.l.b16 %v223
  %v992 = vunpack.c.l.b16 %v224
  %v993 = vunpack.c.l.b16 %v225
  %v994 = vunpack.c.l.b16 %v226
  %v995 = vunpack.c.l.b16 %v227
  %v996 = vunpack.c.l.b16 %v228
  %v997 = vunpack.c.l.b16 %v229
  %v998 = vunpack.c.l.b16 %v230
  %v999 = vunpack.c.l.b16 %v231
  %v1000 = vunpack.c.l.b16 %v232
  %v1001 = vunpack.c.l.b16 %v233
  %v1002 = vunpack.c.l.b16 %v234
  %v1003 = vunpack.c.l.b16 %v235
  %v1004 = vunpack.c.l.b16 %v236
  %v1005 = vunpack.c.l.b16 %v237
  %v1006 = vunpack.c.l.b16 %v238
  %v1007 = vunpack.c.l.b16 %v239
  %v1008 = vunpack.c.l.b16 %v240
  %v1009 = vunpack.c.l.b16 %v241
  %v1010 = vunpack.c.l.b16 %v242
  %v1011 = vunpack.c.l.b16 %v243
  %v1012 = vunpack.c.l.b16 %v244
  %v1013 = vunpack.c.l.b16 %v245
  %v1014 = vunpack.c.l.b16 %v246
  %v1015 = vunpack.c.l.b16 %v247
  %v1016 = vunpack.c.l.b16 %v248
  %v1017 = vunpack.c.l.b16 %v249
  %v1018 = vunpack.c.l.b16 %v250
  %v1019 = vunpack.c.l.b16 %v251
  %v1020 = vunpack.c.l.b16 %v252
  %v1021 = vunpack.c.l.b16 %v253
  %v1022 = vunpack.c.l.b16 %v254
  %v1023 = vunpack.c.l.b16 %v255
  %v1024 = vunpack.c.l.b16 %v256
  %v1025 = vunpack.c.l.b16 %v257
  %v1026 = vunpack.c.l.b16 %v258
  %v1027 = vunpack.c.l.b16 %v259
  %v1028 = vunpack.c.l.b16 %v260
  %v1029 = vunpack.c.l.b16 %v261
  %v1030 = vunpack.c.l.b16 %v262
  %v1031 = vunpack.c.l.b16 %v263
  %v1032 = vunpack.c.l.b16 %v264
  %v1033 = vunpack.c.l.b16 %v265
  %v1034 = vunpack.c.l.b16 %v266
  %v1035 = vunpack.c.l.b16 %v267
  %v1036 = vunpack.c.l.b16 %v268
  %v1037 = vunpack.c.l.b16 %v269
  %v1038 = vunpack.c.l.b16 %v270
  %v1039 = vunpack.c.l.b16 %v271
  %v1040 = vunpack.c.l.b16 %v272
  %v1041 = vunpack.c.l.b16 %v273
  %v1042 = vunpack.c.l.b16 %v274
  %v1043 = vunpack.c.l.b16 %v275
  %v1044 = vunpack.c.l.b16 %v276
  %v1045 = vunpack.c.l.b16 %v277
  %v1046 = vunpack.c.l.b16 %v278
  %v1047 = vunpack.c.l.b16 %v279
  %v1048 = vunpack.c.l.b16 %v280
  %v1049 = vunpack.c.l.b16 %v281
  %v1050 = vunpack.c.l.b16 %v282
  %v1051 = vunpack.c.l.b16 %v283
  %v1052 = vunpack.c.l.b16 %v284
  %v1053 = vunpack.c.l.b16 %v285
  %v1054 = vunpack.c.l.b16 %v286
  %v1055 = vunpack.c.l.b16 %v287
  %v1056 = vunpack.c.l.b16 %v288
  %v1057 = vunpack.c.l.b16 %v289
  %v1058 = vunpack.c.l.b16 %v290
  %v1059 = vunpack.c.l.b16 %v291
  %v1060 = vunpack.c.l.b16 %v292
  %v1061 = vunpack.c.l.b16 %v293
  %v1062 = vunpack.c.l.b16 %v294
  %v1063 = vunpack.c.l.b16 %v295
  %v1064 = vunpack.c.l.b16 %v296
  %v1065 = vunpack.c.l.b16 %v297
  %v1066 = vunpack.c.l.b16 %v298
  %v1067 = vunpack.c.l.b16 %v299
  %v1068 = vunpack.c.l.b16 %v300
  %v1069 = vunpack.c.l.b16 %v301
  %v1070 = vunpack.c.l.b16 %v302
  %v1071 = vunpack.c.l.b16 %v303
  %v1072 = vunpack.c.l.b16 %v304
  %v1073 = vunpack.c.l.b16 %v305
  %v1074 = vunpack.c.l.b16 %v306
  %v1075 = vunpack.c.l.b16 %v307
  %v1076 = vunpack.c.l.b16 %v308
  %v1077 = vunpack.c.l.b16 %v309
  %v1078 = vunpack.c.l.b16 %v310
  %v1079 = vunpack.c.l.b16 %v311
  %v1080 = vunpack.c.l.b16 %v312
  %v1081 = vunpack.c.l.b16 %v313
  %v1082 = vunpack.c.l.b16 %v314
  %v1083 = vunpack.c.l.b16 %v315
  %v1084 = vunpack.c.l.b16 %v316
  %v1085 = vunpack.c.l.b16 %v317
  %v1086 = vunpack.c.l.b16 %v318
  %v1087 = vunpack.c.l.b16 %v319
  %v1088 = vunpack.c.l.b16 %v320
  %v1089 = vunpack.c.l.b16 %v321
  %v1090 = vunpack.c.l.b16 %v322
  %v1091 = vunpack.c.l.b16 %v323
  %v1092 = vunpack.c.l.b16 %v324
  %v1093 = vunpack.c.l.b16 %v325
  %v1094 = vunpack.c.l.b16 %v326
  %v1095 = vunpack.c.l.b16 %v327
  %v1096 = vunpack.c.l.b16 %v328
  %v1097 = vunpack.c.l.b16 %v329
  %v1098 = vunpack.c.l.b16 %v330
  %v1099 = vunpack.c.l.b16 %v331
  %v1100 = vunpack.c.l.b16 %v332
  %v1101 = vunpack.c.l.b16 %v333
  %v1102 = vunpack.c.l.b16 %v334
  %v1103 = vunpack.c.l.b16 %v335
  %v1104 = vunpack.c.l.b16 %v336
  %v1105 = vunpack.c.l.b16 %v337
  %v1106 = vunpack.c.l.b16 %v338
  %v1107 = vunpack.c.l.b16 %v339
  %v1108 = vunpack.c.l.b16 %v340
  %v1109 = vunpack.c.l.b16 %v341
  %v1110 = vunpack.c.l.b16 %v342
  %v1111 = vunpack.c.l.b16 %v343
  %v1112 = vunpack.c.l.b16 %v344
  %v1113 = vunpack.c.l.b16 %v345
  %v1114 = vunpack.c.l.b16 %v346
  %v1115 = vunpack.c.l.b16 %v347
  %v1116 = vunpack.c.l.b16 %v348
  %v1117 = vunpack.c.l.b16 %v349
  %v1118 = vunpack.c.l.b16 %v350
  %v1119 = vunpack.c.l.b16 %v351
  %v1120 = vunpack.c.l.b16 %v352
  %v1121 = vunpack.c.l.b16 %v353
  %v1122 = vunpack.c.l.b16 %v354
  %v1123 = vunpack.c.l.b16 %v355
  %v1124 = vunpack.c.l.b16 %v356
  %v1125 = vunpack.c.l.b16 %v357
  %v1126 = vunpack.c.l.b16 %v358
  %v1127 = vunpack.c.l.b16 %v359
  %v1128 = vunpack.c.l.b16 %v360
  %v1129 = vunpack.c.l.b16 %v361
  %v1130 = vunpack.c.l.b16 %v362
  %v1131 = vunpack.c.l.b16 %v363
  %v1132 = vunpack.c.l.b16 %v364
  %v1133 = vunpack.c.l.b16 %v365
  %v1134 = vunpack.c.l.b16 %v366
  %v1135 = vunpack.c.l.b16 %v367
  %v1136 = vunpack.c.l.b16 %v368
  %v1137 = vunpack.c.l.b16 %v369
  %v1138 = vunpack.c.l.b16 %v370
  %v1139 = vunpack.c.l.b16 %v371
  %v1140 = vunpack.c.l.b16 %v372
  %v1141 = vunpack.c.l.b16 %v373
  %v1142 = vunpack.c.l.b16 %v374
  %v1143 = vunpack.c.l.b16 %v375
  %v1144 = vunpack.c.l.b16 %v376
  %v1145 = vunpack.c.l.b16 %v377
  %v1146 = vunpack.c.l.b16 %v378
  %v1147 = vunpack.c.l.b16 %v379
  %v1148 = vunpack.c.l.b16 %v380
  %v1149 = vunpack.c.l.b16 %v381
  %v1150 = vunpack.c.l.b16 %v382
  %v1151 = vunpack.c.l.b16 %v383
  %v1152 = vunpack.c.l.b16 %v384
  %v1153 = vunpack.c.l.b16 %v385
  %v1154 = vunpack.c.l.b16 %v386
  %v1155 = vunpack.c.l.b16 %v387
  %v1156 = vunpack.c.l.b16 %v388
  %v1157 = vunpack.c.l.b16 %v389
  %v1158 = vunpack.c.l.b16 %v390
  %v1159 = vunpack.c.l.b16 %v391
  %v1160 = vunpack.c.l.b16 %v392
  %v1161 = vunpack.c.l.b16 %v393
  %v1162 = vunpack.c.l.b16 %v394
  %v1163 = vunpack.c.l.b16 %v395
  %v1164 = vunpack.c.l.b16 %v396
  %v1165 = vunpack.c.l.b16 %v397
  %v1166 = vunpack.c.l.b16 %v398
  %v1167 = vunpack.c.l.b16 %v399
  %v1168 = vunpack.c.l.b16 %v400
  %v1169 = vunpack.c.l.b16 %v401
  %v1170 = vunpack.c.l.b16 %v402
  %v1171 = vunpack.c.l.b16 %v403
  %v1172 = vunpack.c.l.b16 %v404
  %v1173 = vunpack.c.l.b16 %v405
  %v1174 = vunpack.c.l.b16 %v406
  %v1175 = vunpack.c.l.b16 %v407
  %v1176 = vunpack.c.l.b16 %v408
  %v1177 = vunpack.c.l.b16 %v409
  %v1178 = vunpack.c.l.b16 %v410
  %v1179 = vunpack.c.l.b16 %v411
  %v1180 = vunpack.c.l.b16 %v412
  %v1181 = vunpack.c.l.b16 %v413
  %v1182 = vunpack.c.l.b16 %v414
  %v1183 = vunpack.c.l.b16 %v415
  %v1184 = vunpack.c.l.b16 %v416
  %v1185 = vunpack.c.l.b16 %v417
  %v1186 = vunpack.c.l.b16 %v418
  %v1187 = vunpack.c.l.b16 %v419
  %v1188 = vunpack.c.l.b16 %v420
  %v1189 = vunpack.c.l.b16 %v421
  %v1190 = vunpack.c.l.b16 %v422
  %v1191 = vunpack.c.l.b16 %v423
  %v1192 = vunpack.c.l.b16 %v424
  %v1193 = vunpack.c.l.b16 %v425
  %v1194 = vunpack.c.l.b16 %v426
  %v1195 = vunpack.c.l.b16 %v427
  %v1196 = vunpack.c.l.b16 %v428
  %v1197 = vunpack.c.l.b16 %v429
  %v1198 = vunpack.c.l.b16 %v430
  %v1199 = vunpack.c.l.b16 %v431
  %v1200 = vunpack.c.l.b16 %v432
  %v1201 = vunpack.c.l.b16 %v433
  %v1202 = vunpack.c.l.b16 %v434
  %v1203 = vunpack.c.l.b16 %v435
  %v1204 = vunpack.c.l.b16 %v436
  %v1205 = vunpack.c.l.b16 %v437
  %v1206 = vunpack.c.l.b16 %v438
  %v1207 = vunpack.c.l.b16 %v439
  %v1208 = vunpack.c.l.b16 %v440
  %v1209 = vunpack.c.l.b16 %v441
  %v1210 = vunpack.c.l.b16 %v442
  %v1211 = vunpack.c.l.b16 %v443
  %v1212 = vunpack.c.l.b16 %v444
  %v1213 = vunpack.c.l.b16 %v445
  %v1214 = vunpack.c.l.b16 %v446
  %v1215 = vunpack.c.l.b16 %v447
  %v1216 = vunpack.c.l.b16 %v448
  %v1217 = vunpack.c.l.b16 %v449
  %v1218 = vunpack.c.l.b16 %v450
  %v1219 = vunpack.c.l.b16 %v451
  %v1220 = vunpack.c.l.b16 %v452
  %v1221 = vunpack.c.l.b16 %v453
  %v1222 = vunpack.c.l.b16 %v454
  %v1223 = vunpack.c.l.b16 %v455
  %v1224 = vunpack.c.l.b16 %v456
  %v1225 = vunpack.c.l.b16 %v457
  %v1226 = vunpack.c.l.b16 %v458
  %v1227 = vunpack.c.l.b16 %v459
  %v1228 = vunpack.c.l.b16 %v460
  %v1229 = vunpack.c.l.b16 %v461
  %v1230 = vunpack.c.l.b16 %v462
  %v1231 = vunpack.c.l.b16 %v463
  %v1232 = vunpack.c.l.b16 %v464
  %v1233 = vunpack.c.l.b16 %v465
  %v1234 = vunpack.c.l.b16 %v466
  %v1235 = vunpack.c.l.b16 %v467
  %v1236 = vunpack.c.l.b16 %v468
  %v1237 = vunpack.c.l.b16 %v469
  %v1238 = vunpack.c.l.b16 %v470
  %v1239 = vunpack.c.l.b16 %v471
  %v1240 = vunpack.c.l.b16 %v472
  %v1241 = vunpack.c.l.b16 %v473
  %v1242 = vunpack.c.l.b16 %v474
  %v1243 = vunpack.c.l.b16 %v475
  %v1244 = vunpack.c.l.b16 %v476
  %v1245 = vunpack.c.l.b16 %v477
  %v1246 = vunpack.c.l.b16 %v478
  %v1247 = vunpack.c.l.b16 %v479
  %v1248 = vunpack.c.l.b16 %v480
  %v1249 = vunpack.c.l.b16 %v481
  %v1250 = vunpack.c.l.b16 %v482
  %v1251 = vunpack.c.l.b16 %v483
  %v1252 = vunpack.c.l.b16 %v484
  %v1253 = vunpack.c.l.b16 %v485
  %v1254 = vunpack.c.l.b16 %v486
  %v1255 = vunpack.c.l.b16 %v487
  %v1256 = vunpack.c.l.b16 %v488
  %v1257 = vunpack.c.l.b16 %v489
  %v1258 = vunpack.c.l.b16 %v490
  %v1259 = vunpack.c.l.b16 %v491
  %v1260 = vunpack.c.l.b16 %v492
  %v1261 = vunpack.c.l.b16 %v493
  %v1262 = vunpack.c.l.b16 %v494
  %v1263 = vunpack.c.l.b16 %v495
  %v1264 = vunpack.c.l.b16 %v496
  %v1265 = vunpack.c.l.b16 %v497
  %v1266 = vunpack.c.l.b16 %v498
  %v1267 = vunpack.c.l.b16 %v499
  %v1268 = vunpack.c.l.b16 %v500
  %v1269 = vunpack.c.l.b16 %v501
  %v1270 = vunpack.c.l.b16 %v502
  %v1271 = vunpack.c.l.b16 %v503
  %v1272 = vunpack.c.l.b16 %v504
  %v1273 = vunpack.c.l.b16 %v505
  %v1274 = vunpack.c.l.b16 %v506
  %v1275 = vunpack.c.l.b16 %v507
  %v1276 = vunpack.c.l.b16 %v508
  %v1277 = vunpack.c.l.b16 %v509
  %v1278 = vunpack.c.l.b16 %v510
  %v1279 = vunpack.c.l.b16 %v511
  %v1280 = vunpack.c.l.b16 %v512
  %v1281 = vunpack.c.l.b16 %v513
  %v1282 = vunpack.c.l.b16 %v514
  %v1283 = vunpack.c.l.b16 %v515
  %v1284 = vunpack.c.l.b16 %v516
  %v1285 = vunpack.c.l.b16 %v517
  %v1286 = vunpack.c.l.b16 %v518
  %v1287 = vunpack.c.l.b16 %v519
  %v1288 = vunpack.c.l.b16 %v520
  %v1289 = vunpack.c.l.b16 %v521
  %v1290 = vunpack.c.l.b16 %v522
  %v1291 = vunpack.c.l.b16 %v523
  %v1292 = vunpack.c.l.b16 %v524
  %v1293 = vunpack.c.l.b16 %v525
  %v1294 = vunpack.c.l.b16 %v526
  %v1295 = vunpack.c.l.b16 %v527
  %v1296 = vunpack.c.l.b16 %v528
  %v1297 = vunpack.c.l.b16 %v529
  %v1298 = vunpack.c.l.b16 %v530
  %v1299 = vunpack.c.l.b16 %v531
  %v1300 = vunpack.c.l.b16 %v532
  %v1301 = vunpack.c.l.b16 %v533
  %v1302 = vunpack.c.l.b16 %v534
  %v1303 = vunpack.c.l.b16 %v535
  %v1304 = vunpack.c.l.b16 %v536
  %v1305 = vunpack.c.l.b16 %v537
  %v1306 = vunpack.c.l.b16 %v538
  %v1307 = vunpack.c.l.b16 %v539
  %v1308 = vunpack.c.l.b16 %v540
  %v1309 = vunpack.c.l.b16 %v541
  %v1310 = vunpack.c.l.b16 %v542
  %v1311 = vunpack.c.l.b16 %v543
  %v1312 = vunpack.c.l.b16 %v544
  %v1313 = vunpack.c.l.b16 %v545
  %v1314 = vunpack.c.l.b16 %v546
  %v1315 = vunpack.c.l.b16 %v547
  %v1316 = vunpack.c.l.b16 %v548
  %v1317 = vunpack.c.l.b16 %v549
  %v1318 = vunpack.c.l.b16 %v550
  %v1319 = vunpack.c.l.b16 %v551
  %v1320 = vunpack.c.l.b16 %v552
  %v1321 = vunpack.c.l.b16 %v553
  %v1322 = vunpack.c.l.b16 %v554
  %v1323 = vunpack.c.l.b16 %v555
  %v1324 = vunpack.c.l.b16 %v556
  %v1325 = vunpack.c.l.b16 %v557
  %v1326 = vunpack.c.l.b16 %v558
  %v1327 = vunpack.c.l.b16 %v559
  %v1328 = vunpack.c.l.b16 %v560
  %v1329 = vunpack.c.l.b16 %v561
  %v1330 = vunpack.c.l.b16 %v562
  %v1331 = vunpack.c.l.b16 %v563
  %v1332 = vunpack.c.l.b16 %v564
  %v1333 = vunpack.c.l.b16 %v565
  %v1334 = vunpack.c.l.b16 %v566
  %v1335 = vunpack.c.l.b16 %v567
  %v1336 = vunpack.c.l.b16 %v568
  %v1337 = vunpack.c.l.b16 %v569
  %v1338 = vunpack.c.l.b16 %v570
  %v1339 = vunpack.c.l.b16 %v571
  %v1340 = vunpack.c.l.b16 %v572
  %v1341 = vunpack.c.l.b16 %v573
  %v1342 = vunpack.c.l.b16 %v574
  %v1343 = vunpack.c.l.b16 %v575
  %v1344 = vunpack.c.l.b16 %v576
  %v1345 = vunpack.c.l.b16 %v577
  %v1346 = vunpack.c.l.b16 %v578
  %v1347 = vunpack.c.l.b16 %v579
  %v1348 = vunpack.c.l.b16 %v580
  %v1349 = vunpack.c.l.b16 %v581
  %v1350 = vunpack.c.l.b16 %v582
  %v1351 = vunpack.c.l.b16 %v583
  %v1352 = vunpack.c.l.b16 %v584
  %v1353 = vunpack.c.l.b16 %v585
  %v1354 = vunpack.c.l.b16 %v586
  %v1355 = vunpack.c.l.b16 %v587
  %v1356 = vunpack.c.l.b16 %v588
  %v1357 = vunpack.c.l.b16 %v589
  %v1358 = vunpack.c.l.b16 %v590
  %v1359 = vpack.c.b16 %v976, %v975
  %v1360 = vpack.c.b16 %v978, %v977
  %v1361 = vpack.c.b16 %v980, %v979
  %v1362 = vpack.c.b16 %v982, %v981
  %v1363 = vpack.c.b16 %v984, %v983
  %v1364 = vpack.c.b16 %v986, %v985
  %v1365 = vpack.c.b16 %v988, %v987
  %v1366 = vpack.c.b16 %v990, %v989
  %v1367 = vpack.c.b16 %v992, %v991
  %v1368 = vpack.c.b16 %v994, %v993
  %v1369 = vpack.c.b16 %v996, %v995
  %v1370 = vpack.c.b16 %v998, %v997
  %v1371 = vpack.c.b16 %v1000, %v999
  %v1372 = vpack.c.b16 %v1002, %v1001
  %v1373 = vpack.c.b16 %v1004, %v1003
  %v1374 = vpack.c.b16 %v1006, %v1005
  %v1375 = vpack.c.b16 %v1008, %v1007
  %v1376 = vpack.c.b16 %v1010, %v1009
  %v1377 = vpack.c.b16 %v1012, %v1011
  %v1378 = vpack.c.b16 %v1014, %v1013
  %v1379 = vpack.c.b16 %v1016, %v1015
  %v1380 = vpack.c.b16 %v1018, %v1017
  %v1381 = vpack.c.b16 %v1020, %v1019
  %v1382 = vpack.c.b16 %v1022, %v1021
  %v1383 = vpack.c.b16 %v1024, %v1023
  %v1384 = vpack.c.b16 %v1026, %v1025
  %v1385 = vpack.c.b16 %v1028, %v1027
  %v1386 = vpack.c.b16 %v1030, %v1029
  %v1387 = vpack.c.b16 %v1032, %v1031
  %v1388 = vpack.c.b16 %v1034, %v1033
  %v1389 = vpack.c.b16 %v1036, %v1035
  %v1390 = vpack.c.b16 %v1038, %v1037
  %v1391 = vpack.c.b16 %v1040, %v1039
  %v1392 = vpack.c.b16 %v1042, %v1041
  %v1393 = vpack.c.b16 %v1044, %v1043
  %v1394 = vpack.c.b16 %v1046, %v1045
  %v1395 = vpack.c.b16 %v1048, %v1047
  %v1396 = vpack.c.b16 %v1050, %v1049
  %v1397 = vpack.c.b16 %v1052, %v1051
  %v1398 = vpack.c.b16 %v1054, %v1053
  %v1399 = vpack.c.b16 %v1056, %v1055
  %v1400 = vpack.c.b16 %v1058, %v1057
  %v1401 = vpack.c.b16 %v1060, %v1059
  %v1402 = vpack.c.b16 %v1062, %v1061
  %v1403 = vpack.c.b16 %v1064, %v1063
  %v1404 = vpack.c.b16 %v1066, %v1065
  %v1405 = vpack.c.b16 %v1068, %v1067
  %v1406 = vpack.c.b16 %v1070, %v1069
  %v1407 = vpack.c.b16 %v1072, %v1071
  %v1408 = vpack.c.b16 %v1074, %v1073
  %v1409 = vpack.c.b16 %v1076, %v1075
  %v1410 = vpack.c.b16 %v1078, %v1077
  %v1411 = vpack.c.b16 %v1080, %v1079
  %v1412 = vpack.c.b16 %v1082, %v1081
  %v1413 = vpack.c.b16 %v1084, %v1083
  %v1414 = vpack.c.b16 %v1086, %v1085
  %v1415 = vpack.c.b16 %v1088, %v1087
  %v1416 = vpack.c.b16 %v1090, %v1089
  %v1417 = vpack.c.b16 %v1092, %v1091
  %v1418 = vpack.c.b16 %v1094, %v1093
  %v1419 = vpack.c.b16 %v1096, %v1095
  %v1420 = vpack.c.b16 %v1098, %v1097
  %v1421 = vpack.c.b16 %v1100, %v1099
  %v1422 = vpack.c.b16 %v1102, %v1101
  %v1423 = vpack.c.b16 %v1104, %v1103
  %v1424 = vpack.c.b16 %v1106, %v1105
  %v1425 = vpack.c.b16 %v1108, %v1107
  %v1426 = vpack.c.b16 %v1110, %v1109
  %v1427 = vpack.c.b16 %v1112, %v1111
  %v1428 = vpack.c.b16 %v1114, %v1113
  %v1429 = vpack.c.b16 %v1116, %v1115
  %v1430 = vpack.c.b16 %v1118, %v1117
  %v1431 = vpack.c.b16 %v1120, %v1119
  %v1432 = vpack.c.b16 %v1122, %v1121
  %v1433 = vpack.c.b16 %v1124, %v1123
  %v1434 = vpack.c.b16 %v1126, %v1125
  %v1435 = vpack.c.b16 %v1128, %v1127
  %v1436 = vpack.c.b16 %v1130, %v1129
  %v1437 = vpack.c.b16 %v1132, %v1131
  %v1438 = vpack.c.b16 %v1134, %v1133
  %v1439 = vpack.c.b16 %v1136, %v1135
  %v1440 = vpack.c.b16 %v1138, %v1137
  %v1441 = vpack.c.b16 %v1140, %v1139
  %v1442 = vpack.c.b16 %v1142, %v1141
  %v1443 = vpack.c.b16 %v1144, %v1143
  %v1444 = vpack.c.b16 %v1146, %v1145
  %v1445 = vpack.c.b16 %v1148, %v1147
  %v1446 = vpack.c.b16 %v1150, %v1149
  %v1447 = vpack.c.b16 %v1152, %v1151
  %v1448 = vpack.c.b16 %v1154, %v1153
  %v1449 = vpack.c.b16 %v1156, %v1155
  %v1450 = vpack.c.b16 %v1158, %v1157
  %v1451 = vpack.c.b16 %v1160, %v1159
  %v1452 = vpack.c.b16 %v1162, %v1161
  %v1453 = vpack.c.b16 %v1164, %v1163
  %v1454 = vpack.c.b16 %v1166, %v1165
  %v1455 = vpack.c.b16 %v1168, %v1167
  %v1456 = vpack.c.b16 %v1170, %v1169
  %v1457 = vpack.c.b16 %v1172, %v1171
  %v1458 = vpack.c.b16 %v1174, %v1173
  %v1459 = vpack.c.b16 %v1176, %v1175
  %v1460 = vpack.c.b16 %v1178, %v1177
  %v1461 = vpack.c.b16 %v1180, %v1179
  %v1462 = vpack.c.b16 %v1182, %v1181
  %v1463 = vpack.c.b16 %v1184, %v1183
  %v1464 = vpack.c.b16 %v1186, %v1185
  %v1465 = vpack.c.b16 %v1188, %v1187
  %v1466 = vpack.c.b16 %v1190, %v1189
  %v1467 = vpack.c.b16 %v1192, %v1191
  %v1468 = vpack.c.b16 %v1194, %v1193
  %v1469 = vpack.c.b16 %v1196, %v1195
  %v1470 = vpack.c.b16 %v1198, %v1197
  %v1471 = vpack.c.b16 %v1200, %v1199
  %v1472 = vpack.c.b16 %v1202, %v1201
  %v1473 = vpack.c.b16 %v1204, %v1203
  %v1474 = vpack.c.b16 %v1206, %v1205
  %v1475 = vpack.c.b16 %v1208, %v1207
  %v1476 = vpack.c.b16 %v1210, %v1209
  %v1477 = vpack.c.b16 %v1212, %v1211
  %v1478 = vpack.c.b16 %v1214, %v1213
  %v1479 = vpack.c.b16 %v1216, %v1215
  %v1480 = vpack.c.b16 %v1218, %v1217
  %v1481 = vpack.c.b16 %v1220, %v1219
  %v1482 = vpack.c.b16 %v1222, %v1221
  %v1483 = vpack.c.b16 %v1224, %v1223
  %v1484 = vpack.c.b16 %v1226, %v1225
  %v1485 = vpack.c.b16 %v1228, %v1227
  %v1486 = vpack.c.b16 %v1230, %v1229
  %v1487 = vpack.c.b16 %v1232, %v1231
  %v1488 = vpack.c.b16 %v1234, %v1233
  %v1489 = vpack.c.b16 %v1236, %v1235
  %v1490 = vpack.c.b16 %v1238, %v1237
  %v1491 = vpack.c.b16 %v1240, %v1239
  %v1492 = vpack.c.b16 %v1242, %v1241
  %v1493 = vpack.c.b16 %v1244, %v1243
  %v1494 = vpack.c.b16 %v1246, %v1245
  %v1495 = vpack.c.b16 %v1248, %v1247
  %v1496 = vpack.c.b16 %v1250, %v1249
  %v1497 = vpack.c.b16 %v1252, %v1251
  %v1498 = vpack.c.b16 %v1254, %v1253
  %v1499 = vpack.c.b16 %v1256, %v1255
  %v1500 = vpack.c.b16 %v1258, %v1257
  %v1501 = vpack.c.b16 %v1260, %v1259
  %v1502 = vpack.c.b16 %v1262, %v1261
  %v1503 = vpack.c.b16 %v1264, %v1263
  %v1504 = vpack.c.b16 %v1266, %v1265
  %v1505 = vpack.c.b16 %v1268, %v1267
  %v1506 = vpack.c.b16 %v1270, %v1269
  %v1507 = vpack.c.b16 %v1272, %v1271
  %v1508 = vpack.c.b16 %v1274, %v1273
  %v1509 = vpack.c.b16 %v1276, %v1275
  %v1510 = vpack.c.b16 %v1278, %v1277
  %v1511 = vpack.c.b16 %v1280, %v1279
  %v1512 = vpack.c.b16 %v1282, %v1281
  %v1513 = vpack.c.b16 %v1284, %v1283
  %v1514 = vpack.c.b16 %v1286, %v1285
  %v1515 = vpack.c.b16 %v1288, %v1287
  %v1516 = vpack.c.b16 %v1290, %v1289
  %v1517 = vpack.c.b16 %v1292, %v1291
  %v1518 = vpack.c.b16 %v1294, %v1293
  %v1519 = vpack.c.b16 %v1296, %v1295
  %v1520 = vpack.c.b16 %v1298, %v1297
  %v1521 = vpack.c.b16 %v1300, %v1299
  %v1522 = vpack.c.b16 %v1302, %v1301
  %v1523 = vpack.c.b16 %v1304, %v1303
  %v1524 = vpack.c.b16 %v1306, %v1305
  %v1525 = vpack.c.b16 %v1308, %v1307
  %v1526 = vpack.c.b16 %v1310, %v1309
  %v1527 = vpack.c.b16 %v1312, %v1311
  %v1528 = vpack.c.b16 %v1314, %v1313
  %v1529 = vpack.c.b16 %v1316, %v1315
  %v1530 = vpack.c.b16 %v1318, %v1317
  %v1531 = vpack.c.b16 %v1320, %v1319
  %v1532 = vpack.c.b16 %v1322, %v1321
  %v1533 = vpack.c.b16 %v1324, %v1323
  %v1534 = vpack.c.b16 %v1326, %v1325
  %v1535 = vpack.c.b16 %v1328, %v1327
  %v1536 = vpack.c.b16 %v1330, %v1329
  %v1537 = vpack.c.b16 %v1332, %v1331
  %v1538 = vpack.c.b16 %v1334, %v1333
  %v1539 = vpack.c.b16 %v1336, %v1335
  %v1540 = vpack.c.b16 %v1338, %v1337
  %v1541 = vpack.c.b16 %v1340, %v1339
  %v1542 = vpack.c.b16 %v1342, %v1341
  %v1543 = vpack.c.b16 %v1344, %v1343
  %v1544 = vpack.c.b16 %v1346, %v1345
  %v1545 = vpack.c.b16 %v1348, %v1347
  %v1546 = vpack.c.b16 %v1350, %v1349
  %v1547 = vpack.c.b16 %v1352, %v1351
  %v1548 = vpack.c.b16 %v1354, %v1353
  %v1549 = vpack.c.b16 %v1356, %v1355
  %v1550 = vpack.c.b16 %v1358, %v1357
  %1743 = vmatprep.subr.bf16.mxu0 0
  %1744 = vmatpush1.bf16.msra.mxu0 %v1366
  %1745 = vmatprep.subr.bf16.mxu0 0
  %1746 = vmatpush1.bf16.msra.mxu0 %v1365
  %1747 = vmatprep.subr.bf16.mxu0 0
  %1748 = vmatpush1.bf16.msra.mxu0 %v1364
  %1749 = vmatprep.subr.bf16.mxu0 0
  %1750 = vmatpush1.bf16.msra.mxu0 %v1363
  %1751 = vmatprep.subr.bf16.mxu0 0
  %1752 = vmatpush1.bf16.msra.mxu0 %v1362
  %1753 = vmatprep.subr.bf16.mxu0 0
  %1754 = vmatpush1.bf16.msra.mxu0 %v1361
  %1755 = vmatprep.subr.bf16.mxu0 0
  %1756 = vmatpush1.bf16.msra.mxu0 %v1360
  %1757 = vmatprep.subr.bf16.mxu0 0
  %1758 = vmatpush1.bf16.msra.mxu0 %v1359
  %1759 = vmatprep.subr.bf16.mxu0 0
  %1760 = vmatpush2.bf16.msra.mxu0 %v1374
  %1761 = vmatprep.subr.bf16.mxu0 0
  %1762 = vmatpush2.bf16.msra.mxu0 %v1373
  %1763 = vmatprep.subr.bf16.mxu0 0
  %1764 = vmatpush2.bf16.msra.mxu0 %v1372
  %1765 = vmatprep.subr.bf16.mxu0 0
  %1766 = vmatpush2.bf16.msra.mxu0 %v1371
  %1767 = vmatprep.subr.bf16.mxu0 0
  %1768 = vmatpush2.bf16.msra.mxu0 %v1370
  %1769 = vmatprep.subr.bf16.mxu0 0
  %1770 = vmatpush2.bf16.msra.mxu0 %v1369
  %1771 = vmatprep.subr.bf16.mxu0 0
  %1772 = vmatpush2.bf16.msra.mxu0 %v1368
  %1773 = vmatprep.subr.bf16.mxu0 0
  %1774 = vmatpush2.bf16.msra.mxu0 %v1367
  %1775 = vmatprep.mubr.bf16.mxu0 %v136
  %1776 = vmatmul.mubr.bf16.gmra.mxu0 %v135
  %v1777 = vpop.f32.mrf.mxu0
  %v1778 = vadd.f32 0.0, %v1777
  %v1779 = vpop.f32.mrf.mxu0
  %v1780 = vpop.f32.mrf.mxu0
  %v1781 = vadd.f32 0.0, %v1780
  %v1782 = vpop.f32.mrf.mxu0
  %1783 = vmatprep.mubr.bf16.mxu0 %v160
  %1784 = vmatmul.mubr.bf16.gmra.mxu0 %v159
  %v1785 = vpop.f32.mrf.mxu0
  %v1786 = vadd.f32 0.0, %v1785
  %v1787 = vpop.f32.mrf.mxu0
  %v1788 = vpop.f32.mrf.mxu0
  %v1789 = vadd.f32 0.0, %v1788
  %v1790 = vpop.f32.mrf.mxu0
  %1791 = vmatprep.mubr.bf16.mxu0 %v184
  %1792 = vmatmul.mubr.bf16.gmra.mxu0 %v183
  %v1793 = vpop.f32.mrf.mxu0
  %v1794 = vadd.f32 0.0, %v1793
  %v1795 = vpop.f32.mrf.mxu0
  %v1796 = vpop.f32.mrf.mxu0
  %v1797 = vpop.f32.mrf.mxu0
  %1798 = vdwg.mxu0
  %1799 = vmatprep.subr.bf16.mxu0 0
  %1800 = vmatpush1.bf16.msra.mxu0 %v1382
  %1801 = vmatprep.subr.bf16.mxu0 0
  %1802 = vmatpush1.bf16.msra.mxu0 %v1381
  %1803 = vmatprep.subr.bf16.mxu0 0
  %1804 = vmatpush1.bf16.msra.mxu0 %v1380
  %1805 = vmatprep.subr.bf16.mxu0 0
  %1806 = vmatpush1.bf16.msra.mxu0 %v1379
  %1807 = vmatprep.subr.bf16.mxu0 0
  %1808 = vmatpush1.bf16.msra.mxu0 %v1378
  %1809 = vmatprep.subr.bf16.mxu0 0
  %1810 = vmatpush1.bf16.msra.mxu0 %v1377
  %1811 = vmatprep.subr.bf16.mxu0 0
  %1812 = vmatpush1.bf16.msra.mxu0 %v1376
  %1813 = vmatprep.subr.bf16.mxu0 0
  %1814 = vmatpush1.bf16.msra.mxu0 %v1375
  %1815 = vmatprep.subr.bf16.mxu0 0
  %1816 = vmatpush2.bf16.msra.mxu0 %v1390
  %1817 = vmatprep.subr.bf16.mxu0 0
  %1818 = vmatpush2.bf16.msra.mxu0 %v1389
  %1819 = vmatprep.subr.bf16.mxu0 0
  %1820 = vmatpush2.bf16.msra.mxu0 %v1388
  %1821 = vmatprep.subr.bf16.mxu0 0
  %1822 = vmatpush2.bf16.msra.mxu0 %v1387
  %1823 = vmatprep.subr.bf16.mxu0 0
  %1824 = vmatpush2.bf16.msra.mxu0 %v1386
  %1825 = vmatprep.subr.bf16.mxu0 0
  %1826 = vmatpush2.bf16.msra.mxu0 %v1385
  %1827 = vmatprep.subr.bf16.mxu0 0
  %1828 = vmatpush2.bf16.msra.mxu0 %v1384
  %1829 = vmatprep.subr.bf16.mxu0 0
  %1830 = vmatpush2.bf16.msra.mxu0 %v1383
  %1831 = vmatprep.mubr.bf16.mxu0 %v138
  %1832 = vmatmul.mubr.bf16.gmra.mxu0 %v137
  %v1833 = vpop.f32.mrf.mxu0
  %v1834 = vadd.f32 %v1778, %v1833
  %v1835 = vpop.f32.mrf.mxu0
  %v1836 = vpop.f32.mrf.mxu0
  %v1837 = vadd.f32 %v1781, %v1836
  %v1838 = vpop.f32.mrf.mxu0
  %1839 = vmatprep.mubr.bf16.mxu0 %v162
  %1840 = vmatmul.mubr.bf16.gmra.mxu0 %v161
  %v1841 = vpop.f32.mrf.mxu0
  %v1842 = vadd.f32 %v1786, %v1841
  %v1843 = vpop.f32.mrf.mxu0
  %v1844 = vpop.f32.mrf.mxu0
  %v1845 = vadd.f32 %v1789, %v1844
  %v1846 = vpop.f32.mrf.mxu0
  %1847 = vmatprep.mubr.bf16.mxu0 %v186
  %1848 = vmatmul.mubr.bf16.gmra.mxu0 %v185
  %v1849 = vpop.f32.mrf.mxu0
  %v1850 = vadd.f32 %v1794, %v1849
  %v1851 = vpop.f32.mrf.mxu0
  %v1852 = vpop.f32.mrf.mxu0
  %v1853 = vpop.f32.mrf.mxu0
  %1854 = vdwg.mxu0
  %1855 = vmatprep.subr.bf16.mxu0 0
  %1856 = vmatpush1.bf16.msra.mxu0 %v1398
  %1857 = vmatprep.subr.bf16.mxu0 0
  %1858 = vmatpush1.bf16.msra.mxu0 %v1397
  %1859 = vmatprep.subr.bf16.mxu0 0
  %1860 = vmatpush1.bf16.msra.mxu0 %v1396
  %1861 = vmatprep.subr.bf16.mxu0 0
  %1862 = vmatpush1.bf16.msra.mxu0 %v1395
  %1863 = vmatprep.subr.bf16.mxu0 0
  %1864 = vmatpush1.bf16.msra.mxu0 %v1394
  %1865 = vmatprep.subr.bf16.mxu0 0
  %1866 = vmatpush1.bf16.msra.mxu0 %v1393
  %1867 = vmatprep.subr.bf16.mxu0 0
  %1868 = vmatpush1.bf16.msra.mxu0 %v1392
  %1869 = vmatprep.subr.bf16.mxu0 0
  %1870 = vmatpush1.bf16.msra.mxu0 %v1391
  %1871 = vmatprep.subr.bf16.mxu0 0
  %1872 = vmatpush2.bf16.msra.mxu0 %v1406
  %1873 = vmatprep.subr.bf16.mxu0 0
  %1874 = vmatpush2.bf16.msra.mxu0 %v1405
  %1875 = vmatprep.subr.bf16.mxu0 0
  %1876 = vmatpush2.bf16.msra.mxu0 %v1404
  %1877 = vmatprep.subr.bf16.mxu0 0
  %1878 = vmatpush2.bf16.msra.mxu0 %v1403
  %1879 = vmatprep.subr.bf16.mxu0 0
  %1880 = vmatpush2.bf16.msra.mxu0 %v1402
  %1881 = vmatprep.subr.bf16.mxu0 0
  %1882 = vmatpush2.bf16.msra.mxu0 %v1401
  %1883 = vmatprep.subr.bf16.mxu0 0
  %1884 = vmatpush2.bf16.msra.mxu0 %v1400
  %1885 = vmatprep.subr.bf16.mxu0 0
  %1886 = vmatpush2.bf16.msra.mxu0 %v1399
  %1887 = vmatprep.mubr.bf16.mxu0 %v140
  %1888 = vmatmul.mubr.bf16.gmra.mxu0 %v139
  %v1889 = vpop.f32.mrf.mxu0
  %v1890 = vadd.f32 %v1834, %v1889
  %v1891 = vpop.f32.mrf.mxu0
  %v1892 = vpop.f32.mrf.mxu0
  %v1893 = vadd.f32 %v1837, %v1892
  %v1894 = vpop.f32.mrf.mxu0
  %1895 = vmatprep.mubr.bf16.mxu0 %v164
  %1896 = vmatmul.mubr.bf16.gmra.mxu0 %v163
  %v1897 = vpop.f32.mrf.mxu0
  %v1898 = vadd.f32 %v1842, %v1897
  %v1899 = vpop.f32.mrf.mxu0
  %v1900 = vpop.f32.mrf.mxu0
  %v1901 = vadd.f32 %v1845, %v1900
  %v1902 = vpop.f32.mrf.mxu0
  %1903 = vmatprep.mubr.bf16.mxu0 %v188
  %1904 = vmatmul.mubr.bf16.gmra.mxu0 %v187
  %v1905 = vpop.f32.mrf.mxu0
  %v1906 = vadd.f32 %v1850, %v1905
  %v1907 = vpop.f32.mrf.mxu0
  %v1908 = vpop.f32.mrf.mxu0
  %v1909 = vpop.f32.mrf.mxu0
  %1910 = vdwg.mxu0
  %1911 = vmatprep.subr.bf16.mxu0 0
  %1912 = vmatpush1.bf16.msra.mxu0 %v1414
  %1913 = vmatprep.subr.bf16.mxu0 0
  %1914 = vmatpush1.bf16.msra.mxu0 %v1413
  %1915 = vmatprep.subr.bf16.mxu0 0
  %1916 = vmatpush1.bf16.msra.mxu0 %v1412
  %1917 = vmatprep.subr.bf16.mxu0 0
  %1918 = vmatpush1.bf16.msra.mxu0 %v1411
  %1919 = vmatprep.subr.bf16.mxu0 0
  %1920 = vmatpush1.bf16.msra.mxu0 %v1410
  %1921 = vmatprep.subr.bf16.mxu0 0
  %1922 = vmatpush1.bf16.msra.mxu0 %v1409
  %1923 = vmatprep.subr.bf16.mxu0 0
  %1924 = vmatpush1.bf16.msra.mxu0 %v1408
  %1925 = vmatprep.subr.bf16.mxu0 0
  %1926 = vmatpush1.bf16.msra.mxu0 %v1407
  %1927 = vmatprep.subr.bf16.mxu0 0
  %1928 = vmatpush2.bf16.msra.mxu0 %v1422
  %1929 = vmatprep.subr.bf16.mxu0 0
  %1930 = vmatpush2.bf16.msra.mxu0 %v1421
  %1931 = vmatprep.subr.bf16.mxu0 0
  %1932 = vmatpush2.bf16.msra.mxu0 %v1420
  %1933 = vmatprep.subr.bf16.mxu0 0
  %1934 = vmatpush2.bf16.msra.mxu0 %v1419
  %1935 = vmatprep.subr.bf16.mxu0 0
  %1936 = vmatpush2.bf16.msra.mxu0 %v1418
  %1937 = vmatprep.subr.bf16.mxu0 0
  %1938 = vmatpush2.bf16.msra.mxu0 %v1417
  %1939 = vmatprep.subr.bf16.mxu0 0
  %1940 = vmatpush2.bf16.msra.mxu0 %v1416
  %1941 = vmatprep.subr.bf16.mxu0 0
  %1942 = vmatpush2.bf16.msra.mxu0 %v1415
  %1943 = vmatprep.mubr.bf16.mxu0 %v142
  %1944 = vmatmul.mubr.bf16.gmra.mxu0 %v141
  %v1945 = vpop.f32.mrf.mxu0
  %v1946 = vadd.f32 %v1890, %v1945
  %v1947 = vpop.f32.mrf.mxu0
  %v1948 = vpop.f32.mrf.mxu0
  %v1949 = vadd.f32 %v1893, %v1948
  %v1950 = vpop.f32.mrf.mxu0
  %1951 = vmatprep.mubr.bf16.mxu0 %v166
  %1952 = vmatmul.mubr.bf16.gmra.mxu0 %v165
  %v1953 = vpop.f32.mrf.mxu0
  %v1954 = vadd.f32 %v1898, %v1953
  %v1955 = vpop.f32.mrf.mxu0
  %v1956 = vpop.f32.mrf.mxu0
  %v1957 = vadd.f32 %v1901, %v1956
  %v1958 = vpop.f32.mrf.mxu0
  %1959 = vmatprep.mubr.bf16.mxu0 %v190
  %1960 = vmatmul.mubr.bf16.gmra.mxu0 %v189
  %v1961 = vpop.f32.mrf.mxu0
  %v1962 = vadd.f32 %v1906, %v1961
  %v1963 = vpop.f32.mrf.mxu0
  %v1964 = vpop.f32.mrf.mxu0
  %v1965 = vpop.f32.mrf.mxu0
  %1966 = vdwg.mxu0
  %1967 = vmatprep.subr.bf16.mxu0 0
  %1968 = vmatpush1.bf16.msra.mxu0 %v1430
  %1969 = vmatprep.subr.bf16.mxu0 0
  %1970 = vmatpush1.bf16.msra.mxu0 %v1429
  %1971 = vmatprep.subr.bf16.mxu0 0
  %1972 = vmatpush1.bf16.msra.mxu0 %v1428
  %1973 = vmatprep.subr.bf16.mxu0 0
  %1974 = vmatpush1.bf16.msra.mxu0 %v1427
  %1975 = vmatprep.subr.bf16.mxu0 0
  %1976 = vmatpush1.bf16.msra.mxu0 %v1426
  %1977 = vmatprep.subr.bf16.mxu0 0
  %1978 = vmatpush1.bf16.msra.mxu0 %v1425
  %1979 = vmatprep.subr.bf16.mxu0 0
  %1980 = vmatpush1.bf16.msra.mxu0 %v1424
  %1981 = vmatprep.subr.bf16.mxu0 0
  %1982 = vmatpush1.bf16.msra.mxu0 %v1423
  %1983 = vmatprep.subr.bf16.mxu0 0
  %1984 = vmatpush2.bf16.msra.mxu0 %v1438
  %1985 = vmatprep.subr.bf16.mxu0 0
  %1986 = vmatpush2.bf16.msra.mxu0 %v1437
  %1987 = vmatprep.subr.bf16.mxu0 0
  %1988 = vmatpush2.bf16.msra.mxu0 %v1436
  %1989 = vmatprep.subr.bf16.mxu0 0
  %1990 = vmatpush2.bf16.msra.mxu0 %v1435
  %1991 = vmatprep.subr.bf16.mxu0 0
  %1992 = vmatpush2.bf16.msra.mxu0 %v1434
  %1993 = vmatprep.subr.bf16.mxu0 0
  %1994 = vmatpush2.bf16.msra.mxu0 %v1433
  %1995 = vmatprep.subr.bf16.mxu0 0
  %1996 = vmatpush2.bf16.msra.mxu0 %v1432
  %1997 = vmatprep.subr.bf16.mxu0 0
  %1998 = vmatpush2.bf16.msra.mxu0 %v1431
  %1999 = vmatprep.mubr.bf16.mxu0 %v144
  %2000 = vmatmul.mubr.bf16.gmra.mxu0 %v143
  %v2001 = vpop.f32.mrf.mxu0
  %v2002 = vadd.f32 %v1946, %v2001
  %v2003 = vpop.f32.mrf.mxu0
  %v2004 = vpop.f32.mrf.mxu0
  %v2005 = vadd.f32 %v1949, %v2004
  %v2006 = vpop.f32.mrf.mxu0
  %2007 = vmatprep.mubr.bf16.mxu0 %v168
  %2008 = vmatmul.mubr.bf16.gmra.mxu0 %v167
  %v2009 = vpop.f32.mrf.mxu0
  %v2010 = vadd.f32 %v1954, %v2009
  %v2011 = vpop.f32.mrf.mxu0
  %v2012 = vpop.f32.mrf.mxu0
  %v2013 = vadd.f32 %v1957, %v2012
  %v2014 = vpop.f32.mrf.mxu0
  %2015 = vmatprep.mubr.bf16.mxu0 %v192
  %2016 = vmatmul.mubr.bf16.gmra.mxu0 %v191
  %v2017 = vpop.f32.mrf.mxu0
  %v2018 = vadd.f32 %v1962, %v2017
  %v2019 = vpop.f32.mrf.mxu0
  %v2020 = vpop.f32.mrf.mxu0
  %v2021 = vpop.f32.mrf.mxu0
  %2022 = vdwg.mxu0
  %2023 = vmatprep.subr.bf16.mxu0 0
  %2024 = vmatpush1.bf16.msra.mxu0 %v1446
  %2025 = vmatprep.subr.bf16.mxu0 0
  %2026 = vmatpush1.bf16.msra.mxu0 %v1445
  %2027 = vmatprep.subr.bf16.mxu0 0
  %2028 = vmatpush1.bf16.msra.mxu0 %v1444
  %2029 = vmatprep.subr.bf16.mxu0 0
  %2030 = vmatpush1.bf16.msra.mxu0 %v1443
  %2031 = vmatprep.subr.bf16.mxu0 0
  %2032 = vmatpush1.bf16.msra.mxu0 %v1442
  %2033 = vmatprep.subr.bf16.mxu0 0
  %2034 = vmatpush1.bf16.msra.mxu0 %v1441
  %2035 = vmatprep.subr.bf16.mxu0 0
  %2036 = vmatpush1.bf16.msra.mxu0 %v1440
  %2037 = vmatprep.subr.bf16.mxu0 0
  %2038 = vmatpush1.bf16.msra.mxu0 %v1439
  %2039 = vmatprep.subr.bf16.mxu0 0
  %2040 = vmatpush2.bf16.msra.mxu0 %v1454
  %2041 = vmatprep.subr.bf16.mxu0 0
  %2042 = vmatpush2.bf16.msra.mxu0 %v1453
  %2043 = vmatprep.subr.bf16.mxu0 0
  %2044 = vmatpush2.bf16.msra.mxu0 %v1452
  %2045 = vmatprep.subr.bf16.mxu0 0
  %2046 = vmatpush2.bf16.msra.mxu0 %v1451
  %2047 = vmatprep.subr.bf16.mxu0 0
  %2048 = vmatpush2.bf16.msra.mxu0 %v1450
  %2049 = vmatprep.subr.bf16.mxu0 0
  %2050 = vmatpush2.bf16.msra.mxu0 %v1449
  %2051 = vmatprep.subr.bf16.mxu0 0
  %2052 = vmatpush2.bf16.msra.mxu0 %v1448
  %2053 = vmatprep.subr.bf16.mxu0 0
  %2054 = vmatpush2.bf16.msra.mxu0 %v1447
  %2055 = vmatprep.mubr.bf16.mxu0 %v146
  %2056 = vmatmul.mubr.bf16.gmra.mxu0 %v145
  %v2057 = vpop.f32.mrf.mxu0
  %v2058 = vadd.f32 %v2002, %v2057
  %v2059 = vpop.f32.mrf.mxu0
  %v2060 = vpop.f32.mrf.mxu0
  %v2061 = vadd.f32 %v2005, %v2060
  %v2062 = vpop.f32.mrf.mxu0
  %2063 = vmatprep.mubr.bf16.mxu0 %v170
  %2064 = vmatmul.mubr.bf16.gmra.mxu0 %v169
  %v2065 = vpop.f32.mrf.mxu0
  %v2066 = vadd.f32 %v2010, %v2065
  %v2067 = vpop.f32.mrf.mxu0
  %v2068 = vpop.f32.mrf.mxu0
  %v2069 = vadd.f32 %v2013, %v2068
  %v2070 = vpop.f32.mrf.mxu0
  %2071 = vmatprep.mubr.bf16.mxu0 %v194
  %2072 = vmatmul.mubr.bf16.gmra.mxu0 %v193
  %v2073 = vpop.f32.mrf.mxu0
  %v2074 = vadd.f32 %v2018, %v2073
  %v2075 = vpop.f32.mrf.mxu0
  %v2076 = vpop.f32.mrf.mxu0
  %v2077 = vpop.f32.mrf.mxu0
  %2078 = vdwg.mxu0
  %2079 = vmatprep.subr.bf16.mxu0 0
  %2080 = vmatpush1.bf16.msra.mxu0 %v1462
  %2081 = vmatprep.subr.bf16.mxu0 0
  %2082 = vmatpush1.bf16.msra.mxu0 %v1461
  %2083 = vmatprep.subr.bf16.mxu0 0
  %2084 = vmatpush1.bf16.msra.mxu0 %v1460
  %2085 = vmatprep.subr.bf16.mxu0 0
  %2086 = vmatpush1.bf16.msra.mxu0 %v1459
  %2087 = vmatprep.subr.bf16.mxu0 0
  %2088 = vmatpush1.bf16.msra.mxu0 %v1458
  %2089 = vmatprep.subr.bf16.mxu0 0
  %2090 = vmatpush1.bf16.msra.mxu0 %v1457
  %2091 = vmatprep.subr.bf16.mxu0 0
  %2092 = vmatpush1.bf16.msra.mxu0 %v1456
  %2093 = vmatprep.subr.bf16.mxu0 0
  %2094 = vmatpush1.bf16.msra.mxu0 %v1455
  %2095 = vmatprep.subr.bf16.mxu0 0
  %2096 = vmatpush2.bf16.msra.mxu0 %v1470
  %2097 = vmatprep.subr.bf16.mxu0 0
  %2098 = vmatpush2.bf16.msra.mxu0 %v1469
  %2099 = vmatprep.subr.bf16.mxu0 0
  %2100 = vmatpush2.bf16.msra.mxu0 %v1468
  %2101 = vmatprep.subr.bf16.mxu0 0
  %2102 = vmatpush2.bf16.msra.mxu0 %v1467
  %2103 = vmatprep.subr.bf16.mxu0 0
  %2104 = vmatpush2.bf16.msra.mxu0 %v1466
  %2105 = vmatprep.subr.bf16.mxu0 0
  %2106 = vmatpush2.bf16.msra.mxu0 %v1465
  %2107 = vmatprep.subr.bf16.mxu0 0
  %2108 = vmatpush2.bf16.msra.mxu0 %v1464
  %2109 = vmatprep.subr.bf16.mxu0 0
  %2110 = vmatpush2.bf16.msra.mxu0 %v1463
  %2111 = vmatprep.mubr.bf16.mxu0 %v148
  %2112 = vmatmul.mubr.bf16.gmra.mxu0 %v147
  %v2113 = vpop.f32.mrf.mxu0
  %v2114 = vadd.f32 %v2058, %v2113
  %v2115 = vpop.f32.mrf.mxu0
  %v2116 = vpop.f32.mrf.mxu0
  %v2117 = vadd.f32 %v2061, %v2116
  %v2118 = vpop.f32.mrf.mxu0
  %2119 = vmatprep.mubr.bf16.mxu0 %v172
  %2120 = vmatmul.mubr.bf16.gmra.mxu0 %v171
  %v2121 = vpop.f32.mrf.mxu0
  %v2122 = vadd.f32 %v2066, %v2121
  %v2123 = vpop.f32.mrf.mxu0
  %v2124 = vpop.f32.mrf.mxu0
  %v2125 = vadd.f32 %v2069, %v2124
  %v2126 = vpop.f32.mrf.mxu0
  %2127 = vmatprep.mubr.bf16.mxu0 %v196
  %2128 = vmatmul.mubr.bf16.gmra.mxu0 %v195
  %v2129 = vpop.f32.mrf.mxu0
  %v2130 = vadd.f32 %v2074, %v2129
  %v2131 = vpop.f32.mrf.mxu0
  %v2132 = vpop.f32.mrf.mxu0
  %v2133 = vpop.f32.mrf.mxu0
  %2134 = vdwg.mxu0
  %2135 = vmatprep.subr.bf16.mxu0 0
  %2136 = vmatpush1.bf16.msra.mxu0 %v1478
  %2137 = vmatprep.subr.bf16.mxu0 0
  %2138 = vmatpush1.bf16.msra.mxu0 %v1477
  %2139 = vmatprep.subr.bf16.mxu0 0
  %2140 = vmatpush1.bf16.msra.mxu0 %v1476
  %2141 = vmatprep.subr.bf16.mxu0 0
  %2142 = vmatpush1.bf16.msra.mxu0 %v1475
  %2143 = vmatprep.subr.bf16.mxu0 0
  %2144 = vmatpush1.bf16.msra.mxu0 %v1474
  %2145 = vmatprep.subr.bf16.mxu0 0
  %2146 = vmatpush1.bf16.msra.mxu0 %v1473
  %2147 = vmatprep.subr.bf16.mxu0 0
  %2148 = vmatpush1.bf16.msra.mxu0 %v1472
  %2149 = vmatprep.subr.bf16.mxu0 0
  %2150 = vmatpush1.bf16.msra.mxu0 %v1471
  %2151 = vmatprep.subr.bf16.mxu0 0
  %2152 = vmatpush2.bf16.msra.mxu0 %v1486
  %2153 = vmatprep.subr.bf16.mxu0 0
  %2154 = vmatpush2.bf16.msra.mxu0 %v1485
  %2155 = vmatprep.subr.bf16.mxu0 0
  %2156 = vmatpush2.bf16.msra.mxu0 %v1484
  %2157 = vmatprep.subr.bf16.mxu0 0
  %2158 = vmatpush2.bf16.msra.mxu0 %v1483
  %2159 = vmatprep.subr.bf16.mxu0 0
  %2160 = vmatpush2.bf16.msra.mxu0 %v1482
  %2161 = vmatprep.subr.bf16.mxu0 0
  %2162 = vmatpush2.bf16.msra.mxu0 %v1481
  %2163 = vmatprep.subr.bf16.mxu0 0
  %2164 = vmatpush2.bf16.msra.mxu0 %v1480
  %2165 = vmatprep.subr.bf16.mxu0 0
  %2166 = vmatpush2.bf16.msra.mxu0 %v1479
  %2167 = vmatprep.mubr.bf16.mxu0 %v150
  %2168 = vmatmul.mubr.bf16.gmra.mxu0 %v149
  %v2169 = vpop.f32.mrf.mxu0
  %v2170 = vadd.f32 %v2114, %v2169
  %v2171 = vpop.f32.mrf.mxu0
  %v2172 = vpop.f32.mrf.mxu0
  %v2173 = vadd.f32 %v2117, %v2172
  %v2174 = vpop.f32.mrf.mxu0
  %2175 = vmatprep.mubr.bf16.mxu0 %v174
  %2176 = vmatmul.mubr.bf16.gmra.mxu0 %v173
  %v2177 = vpop.f32.mrf.mxu0
  %v2178 = vadd.f32 %v2122, %v2177
  %v2179 = vpop.f32.mrf.mxu0
  %v2180 = vpop.f32.mrf.mxu0
  %v2181 = vadd.f32 %v2125, %v2180
  %v2182 = vpop.f32.mrf.mxu0
  %2183 = vmatprep.mubr.bf16.mxu0 %v198
  %2184 = vmatmul.mubr.bf16.gmra.mxu0 %v197
  %v2185 = vpop.f32.mrf.mxu0
  %v2186 = vadd.f32 %v2130, %v2185
  %v2187 = vpop.f32.mrf.mxu0
  %v2188 = vpop.f32.mrf.mxu0
  %v2189 = vpop.f32.mrf.mxu0
  %2190 = vdwg.mxu0
  %2191 = vmatprep.subr.bf16.mxu0 0
  %2192 = vmatpush1.bf16.msra.mxu0 %v1494
  %2193 = vmatprep.subr.bf16.mxu0 0
  %2194 = vmatpush1.bf16.msra.mxu0 %v1493
  %2195 = vmatprep.subr.bf16.mxu0 0
  %2196 = vmatpush1.bf16.msra.mxu0 %v1492
  %2197 = vmatprep.subr.bf16.mxu0 0
  %2198 = vmatpush1.bf16.msra.mxu0 %v1491
  %2199 = vmatprep.subr.bf16.mxu0 0
  %2200 = vmatpush1.bf16.msra.mxu0 %v1490
  %2201 = vmatprep.subr.bf16.mxu0 0
  %2202 = vmatpush1.bf16.msra.mxu0 %v1489
  %2203 = vmatprep.subr.bf16.mxu0 0
  %2204 = vmatpush1.bf16.msra.mxu0 %v1488
  %2205 = vmatprep.subr.bf16.mxu0 0
  %2206 = vmatpush1.bf16.msra.mxu0 %v1487
  %2207 = vmatprep.subr.bf16.mxu0 0
  %2208 = vmatpush2.bf16.msra.mxu0 %v1502
  %2209 = vmatprep.subr.bf16.mxu0 0
  %2210 = vmatpush2.bf16.msra.mxu0 %v1501
  %2211 = vmatprep.subr.bf16.mxu0 0
  %2212 = vmatpush2.bf16.msra.mxu0 %v1500
  %2213 = vmatprep.subr.bf16.mxu0 0
  %2214 = vmatpush2.bf16.msra.mxu0 %v1499
  %2215 = vmatprep.subr.bf16.mxu0 0
  %2216 = vmatpush2.bf16.msra.mxu0 %v1498
  %2217 = vmatprep.subr.bf16.mxu0 0
  %2218 = vmatpush2.bf16.msra.mxu0 %v1497
  %2219 = vmatprep.subr.bf16.mxu0 0
  %2220 = vmatpush2.bf16.msra.mxu0 %v1496
  %2221 = vmatprep.subr.bf16.mxu0 0
  %2222 = vmatpush2.bf16.msra.mxu0 %v1495
  %2223 = vmatprep.mubr.bf16.mxu0 %v152
  %2224 = vmatmul.mubr.bf16.gmra.mxu0 %v151
  %v2225 = vpop.f32.mrf.mxu0
  %v2226 = vadd.f32 %v2170, %v2225
  %v2227 = vpop.f32.mrf.mxu0
  %v2228 = vpop.f32.mrf.mxu0
  %v2229 = vadd.f32 %v2173, %v2228
  %v2230 = vpop.f32.mrf.mxu0
  %2231 = vmatprep.mubr.bf16.mxu0 %v176
  %2232 = vmatmul.mubr.bf16.gmra.mxu0 %v175
  %v2233 = vpop.f32.mrf.mxu0
  %v2234 = vadd.f32 %v2178, %v2233
  %v2235 = vpop.f32.mrf.mxu0
  %v2236 = vpop.f32.mrf.mxu0
  %v2237 = vadd.f32 %v2181, %v2236
  %v2238 = vpop.f32.mrf.mxu0
  %2239 = vmatprep.mubr.bf16.mxu0 %v200
  %2240 = vmatmul.mubr.bf16.gmra.mxu0 %v199
  %v2241 = vpop.f32.mrf.mxu0
  %v2242 = vadd.f32 %v2186, %v2241
  %v2243 = vpop.f32.mrf.mxu0
  %v2244 = vpop.f32.mrf.mxu0
  %v2245 = vpop.f32.mrf.mxu0
  %2246 = vdwg.mxu0
  %2247 = vmatprep.subr.bf16.mxu0 0
  %2248 = vmatpush1.bf16.msra.mxu0 %v1510
  %2249 = vmatprep.subr.bf16.mxu0 0
  %2250 = vmatpush1.bf16.msra.mxu0 %v1509
  %2251 = vmatprep.subr.bf16.mxu0 0
  %2252 = vmatpush1.bf16.msra.mxu0 %v1508
  %2253 = vmatprep.subr.bf16.mxu0 0
  %2254 = vmatpush1.bf16.msra.mxu0 %v1507
  %2255 = vmatprep.subr.bf16.mxu0 0
  %2256 = vmatpush1.bf16.msra.mxu0 %v1506
  %2257 = vmatprep.subr.bf16.mxu0 0
  %2258 = vmatpush1.bf16.msra.mxu0 %v1505
  %2259 = vmatprep.subr.bf16.mxu0 0
  %2260 = vmatpush1.bf16.msra.mxu0 %v1504
  %2261 = vmatprep.subr.bf16.mxu0 0
  %2262 = vmatpush1.bf16.msra.mxu0 %v1503
  %2263 = vmatprep.subr.bf16.mxu0 0
  %2264 = vmatpush2.bf16.msra.mxu0 %v1518
  %2265 = vmatprep.subr.bf16.mxu0 0
  %2266 = vmatpush2.bf16.msra.mxu0 %v1517
  %2267 = vmatprep.subr.bf16.mxu0 0
  %2268 = vmatpush2.bf16.msra.mxu0 %v1516
  %2269 = vmatprep.subr.bf16.mxu0 0
  %2270 = vmatpush2.bf16.msra.mxu0 %v1515
  %2271 = vmatprep.subr.bf16.mxu0 0
  %2272 = vmatpush2.bf16.msra.mxu0 %v1514
  %2273 = vmatprep.subr.bf16.mxu0 0
  %2274 = vmatpush2.bf16.msra.mxu0 %v1513
  %2275 = vmatprep.subr.bf16.mxu0 0
  %2276 = vmatpush2.bf16.msra.mxu0 %v1512
  %2277 = vmatprep.subr.bf16.mxu0 0
  %2278 = vmatpush2.bf16.msra.mxu0 %v1511
  %2279 = vmatprep.mubr.bf16.mxu0 %v154
  %2280 = vmatmul.mubr.bf16.gmra.mxu0 %v153
  %v2281 = vpop.f32.mrf.mxu0
  %v2282 = vadd.f32 %v2226, %v2281
  %v2283 = vpop.f32.mrf.mxu0
  %v2284 = vpop.f32.mrf.mxu0
  %v2285 = vadd.f32 %v2229, %v2284
  %v2286 = vpop.f32.mrf.mxu0
  %2287 = vmatprep.mubr.bf16.mxu0 %v178
  %2288 = vmatmul.mubr.bf16.gmra.mxu0 %v177
  %v2289 = vpop.f32.mrf.mxu0
  %v2290 = vadd.f32 %v2234, %v2289
  %v2291 = vpop.f32.mrf.mxu0
  %v2292 = vpop.f32.mrf.mxu0
  %v2293 = vadd.f32 %v2237, %v2292
  %v2294 = vpop.f32.mrf.mxu0
  %2295 = vmatprep.mubr.bf16.mxu0 %v202
  %2296 = vmatmul.mubr.bf16.gmra.mxu0 %v201
  %v2297 = vpop.f32.mrf.mxu0
  %v2298 = vadd.f32 %v2242, %v2297
  %v2299 = vpop.f32.mrf.mxu0
  %v2300 = vpop.f32.mrf.mxu0
  %v2301 = vpop.f32.mrf.mxu0
  %2302 = vdwg.mxu0
  %2303 = vmatprep.subr.bf16.mxu0 0
  %2304 = vmatpush1.bf16.msra.mxu0 %v1526
  %2305 = vmatprep.subr.bf16.mxu0 0
  %2306 = vmatpush1.bf16.msra.mxu0 %v1525
  %2307 = vmatprep.subr.bf16.mxu0 0
  %2308 = vmatpush1.bf16.msra.mxu0 %v1524
  %2309 = vmatprep.subr.bf16.mxu0 0
  %2310 = vmatpush1.bf16.msra.mxu0 %v1523
  %2311 = vmatprep.subr.bf16.mxu0 0
  %2312 = vmatpush1.bf16.msra.mxu0 %v1522
  %2313 = vmatprep.subr.bf16.mxu0 0
  %2314 = vmatpush1.bf16.msra.mxu0 %v1521
  %2315 = vmatprep.subr.bf16.mxu0 0
  %2316 = vmatpush1.bf16.msra.mxu0 %v1520
  %2317 = vmatprep.subr.bf16.mxu0 0
  %2318 = vmatpush1.bf16.msra.mxu0 %v1519
  %2319 = vmatprep.subr.bf16.mxu0 0
  %2320 = vmatpush2.bf16.msra.mxu0 %v1534
  %2321 = vmatprep.subr.bf16.mxu0 0
  %2322 = vmatpush2.bf16.msra.mxu0 %v1533
  %2323 = vmatprep.subr.bf16.mxu0 0
  %2324 = vmatpush2.bf16.msra.mxu0 %v1532
  %2325 = vmatprep.subr.bf16.mxu0 0
  %2326 = vmatpush2.bf16.msra.mxu0 %v1531
  %2327 = vmatprep.subr.bf16.mxu0 0
  %2328 = vmatpush2.bf16.msra.mxu0 %v1530
  %2329 = vmatprep.subr.bf16.mxu0 0
  %2330 = vmatpush2.bf16.msra.mxu0 %v1529
  %2331 = vmatprep.subr.bf16.mxu0 0
  %2332 = vmatpush2.bf16.msra.mxu0 %v1528
  %2333 = vmatprep.subr.bf16.mxu0 0
  %2334 = vmatpush2.bf16.msra.mxu0 %v1527
  %2335 = vmatprep.mubr.bf16.mxu0 %v156
  %2336 = vmatmul.mubr.bf16.gmra.mxu0 %v155
  %v2337 = vpop.f32.mrf.mxu0
  %v2338 = vadd.f32 %v2282, %v2337
  %v2339 = vpop.f32.mrf.mxu0
  %v2340 = vpop.f32.mrf.mxu0
  %v2341 = vadd.f32 %v2285, %v2340
  %v2342 = vpop.f32.mrf.mxu0
  %2343 = vmatprep.mubr.bf16.mxu0 %v180
  %2344 = vmatmul.mubr.bf16.gmra.mxu0 %v179
  %v2345 = vpop.f32.mrf.mxu0
  %v2346 = vadd.f32 %v2290, %v2345
  %v2347 = vpop.f32.mrf.mxu0
  %v2348 = vpop.f32.mrf.mxu0
  %v2349 = vadd.f32 %v2293, %v2348
  %v2350 = vpop.f32.mrf.mxu0
  %2351 = vmatprep.mubr.bf16.mxu0 %v204
  %2352 = vmatmul.mubr.bf16.gmra.mxu0 %v203
  %v2353 = vpop.f32.mrf.mxu0
  %v2354 = vadd.f32 %v2298, %v2353
  %v2355 = vpop.f32.mrf.mxu0
  %v2356 = vpop.f32.mrf.mxu0
  %v2357 = vpop.f32.mrf.mxu0
  %2358 = vdwg.mxu0
  %2359 = vmatprep.subr.bf16.mxu0 0
  %2360 = vmatpush1.bf16.msra.mxu0 %v1542
  %2361 = vmatprep.subr.bf16.mxu0 0
  %2362 = vmatpush1.bf16.msra.mxu0 %v1541
  %2363 = vmatprep.subr.bf16.mxu0 0
  %2364 = vmatpush1.bf16.msra.mxu0 %v1540
  %2365 = vmatprep.subr.bf16.mxu0 0
  %2366 = vmatpush1.bf16.msra.mxu0 %v1539
  %2367 = vmatprep.subr.bf16.mxu0 0
  %2368 = vmatpush1.bf16.msra.mxu0 %v1538
  %2369 = vmatprep.subr.bf16.mxu0 0
  %2370 = vmatpush1.bf16.msra.mxu0 %v1537
  %2371 = vmatprep.subr.bf16.mxu0 0
  %2372 = vmatpush1.bf16.msra.mxu0 %v1536
  %2373 = vmatprep.subr.bf16.mxu0 0
  %2374 = vmatpush1.bf16.msra.mxu0 %v1535
  %2375 = vmatprep.subr.bf16.mxu0 0
  %2376 = vmatpush2.bf16.msra.mxu0 %v1550
  %2377 = vmatprep.subr.bf16.mxu0 0
  %2378 = vmatpush2.bf16.msra.mxu0 %v1549
  %2379 = vmatprep.subr.bf16.mxu0 0
  %2380 = vmatpush2.bf16.msra.mxu0 %v1548
  %2381 = vmatprep.subr.bf16.mxu0 0
  %2382 = vmatpush2.bf16.msra.mxu0 %v1547
  %2383 = vmatprep.subr.bf16.mxu0 0
  %2384 = vmatpush2.bf16.msra.mxu0 %v1546
  %2385 = vmatprep.subr.bf16.mxu0 0
  %2386 = vmatpush2.bf16.msra.mxu0 %v1545
  %2387 = vmatprep.subr.bf16.mxu0 0
  %2388 = vmatpush2.bf16.msra.mxu0 %v1544
  %2389 = vmatprep.subr.bf16.mxu0 0
  %2390 = vmatpush2.bf16.msra.mxu0 %v1543
  %2391 = vmatprep.mubr.bf16.mxu0 %v158
  %2392 = vmatmul.mubr.bf16.gmra.mxu0 %v157
  %v2393 = vpop.f32.mrf.mxu0
  %v2394 = vadd.f32 %v2338, %v2393
  %v2395 = vpop.f32.mrf.mxu0
  %v2396 = vpop.f32.mrf.mxu0
  %v2397 = vadd.f32 %v2341, %v2396
  %v2398 = vpop.f32.mrf.mxu0
  %2399 = vmatprep.mubr.bf16.mxu0 %v182
  %2400 = vmatmul.mubr.bf16.gmra.mxu0 %v181
  %v2401 = vpop.f32.mrf.mxu0
  %v2402 = vadd.f32 %v2346, %v2401
  %v2403 = vpop.f32.mrf.mxu0
  %v2404 = vpop.f32.mrf.mxu0
  %v2405 = vadd.f32 %v2349, %v2404
  %v2406 = vpop.f32.mrf.mxu0
  %2407 = vmatprep.mubr.bf16.mxu0 %v206
  %2408 = vmatmul.mubr.bf16.gmra.mxu0 %v205
  %v2409 = vpop.f32.mrf.mxu0
  %v2410 = vadd.f32 %v2354, %v2409
  %v2411 = vpop.f32.mrf.mxu0
  %v2412 = vpop.f32.mrf.mxu0
  %v2413 = vpop.f32.mrf.mxu0
  %2414 = vdwg.mxu0
  %v2415 = vld [vmem:[%s2] sm:$0xff]
  %v2416 = vld [vmem:[%s2 + $0x8] sm:$0xff]
  %v2417 = vld [vmem:[%s2 + $0x10] sm:$0xff]
  %vm2418 = vcmask 326656
  %v2420 = vsel %vm2418, %v2415, 0
  %v2423 = vsel %vm2418, %v2416, 0
  %v2426 = vsel %vm2418, %v2417, 0
  %2428 = vmatprep.subr.mxu0 0.0
  %2429 = vmatpush1.msra.mxu0 0.0
  %2430 = vmatprep.subr.mxu0 0.0
  %2431 = vmatpush1.msra.mxu0 0.0
  %2432 = vmatprep.subr.mxu0 0.0
  %2433 = vmatpush1.msra.mxu0 0.0
  %2434 = vmatprep.subr.mxu0 0.0
  %2435 = vmatpush1.msra.mxu0 0.0
  %2436 = vmatprep.subr.mxu0 0.0
  %2437 = vmatpush1.msra.mxu0 0.0
  %2438 = vmatprep.subr.mxu0 0.0
  %2439 = vmatpush1.msra.mxu0 0.0
  %2440 = vmatprep.subr.mxu0 0.0
  %2441 = vmatpush1.msra.mxu0 0.0
  %2442 = vmatprep.subr.mxu0 0.0
  %2443 = vmatpush1.msra.mxu0 0.0
  %2444 = vmatprep.subr.mxu0 0.0
  %2445 = vmatpush1.msra.mxu0 0.0
  %2446 = vmatprep.subr.mxu0 0.0
  %2447 = vmatpush1.msra.mxu0 0.0
  %2448 = vmatprep.subr.mxu0 0.0
  %2449 = vmatpush1.msra.mxu0 0.0
  %2450 = vmatprep.subr.mxu0 0.0
  %2451 = vmatpush1.msra.mxu0 %v2410
  %2452 = vmatprep.subr.mxu0 0.0
  %2453 = vmatpush1.msra.mxu0 %v2405
  %2454 = vmatprep.subr.mxu0 0.0
  %2455 = vmatpush1.msra.mxu0 %v2402
  %2456 = vmatprep.subr.mxu0 0.0
  %2457 = vmatpush1.msra.mxu0 %v2397
  %2458 = vmatprep.subr.mxu0 0.0
  %2459 = vmatpush1.msra.mxu0 %v2394
  %2460 = vmatprep.subr.mxu0 0.0
  %2461 = vmatpush2.msra.mxu0 0.0
  %2462 = vmatprep.subr.mxu0 0.0
  %2463 = vmatpush2.msra.mxu0 0.0
  %2464 = vmatprep.subr.mxu0 0.0
  %2465 = vmatpush2.msra.mxu0 0.0
  %2466 = vmatprep.subr.mxu0 0.0
  %2467 = vmatpush2.msra.mxu0 0.0
  %2468 = vmatprep.subr.mxu0 0.0
  %2469 = vmatpush2.msra.mxu0 0.0
  %2470 = vmatprep.subr.mxu0 0.0
  %2471 = vmatpush2.msra.mxu0 0.0
  %2472 = vmatprep.subr.mxu0 0.0
  %2473 = vmatpush2.msra.mxu0 0.0
  %2474 = vmatprep.subr.mxu0 0.0
  %2475 = vmatpush2.msra.mxu0 0.0
  %2476 = vmatprep.subr.mxu0 0.0
  %2477 = vmatpush2.msra.mxu0 0.0
  %2478 = vmatprep.subr.mxu0 0.0
  %2479 = vmatpush2.msra.mxu0 0.0
  %2480 = vmatprep.subr.mxu0 0.0
  %2481 = vmatpush2.msra.mxu0 0.0
  %2482 = vmatprep.subr.mxu0 0.0
  %2483 = vmatpush2.msra.mxu0 0.0
  %2484 = vmatprep.subr.mxu0 0.0
  %2485 = vmatpush2.msra.mxu0 0.0
  %2486 = vmatprep.subr.mxu0 0.0
  %2487 = vmatpush2.msra.mxu0 0.0
  %2488 = vmatprep.subr.mxu0 0.0
  %2489 = vmatpush2.msra.mxu0 0.0
  %2490 = vmatprep.subr.mxu0 0.0
  %2491 = vmatpush2.msra.mxu0 0.0
  %2492 = vmatprep.mubr.f32.mxu0 0.0
  %2493 = vmatmul.mubr.f32.gmra.mxu0 %v2420
  %v2494 = vpop.f32.mrf.mxu0
  %v2495 = vadd.f32 0.0, %v2494
  %v2496 = vpop.f32.mrf.mxu0
  %2497 = vmatprep.mubr.f32.mxu0 0.0
  %2498 = vmatmul.mubr.f32.gmra.mxu0 %v2423
  %v2499 = vpop.f32.mrf.mxu0
  %v2500 = vadd.f32 0.0, %v2499
  %v2501 = vpop.f32.mrf.mxu0
  %2502 = vmatprep.mubr.f32.mxu0 0.0
  %2503 = vmatmul.mubr.f32.gmra.mxu0 %v2426
  %v2504 = vpop.f32.mrf.mxu0
  %v2505 = vadd.f32 0.0, %v2504
  %v2506 = vpop.f32.mrf.mxu0
  %2507 = vdwg.mxu0
  %v2508 = vmul.f32 %v2500, 0.33333334
  %v2510 = vcombine.high %v2495, %v2495
  %v2512 = vunpack.c.l.s4 1966171168
  %v2513 = vunpack.c.0.s8 %v2512
  %v2514 = vlaneseq
  %v2515 = vshrl.u32 %v2514, 7
  %v2516 = vsub.s32 %v2513, %v2515
  %v2517 = vrot.slane %v2495, %v2516
  %v2519 = vunpack.c.l.s4 1966171168
  %v2520 = vunpack.c.0.s8 %v2519
  %v2521 = vlaneseq
  %v2522 = vshrl.u32 %v2521, 7
  %v2523 = vsub.s32 %v2520, %v2522
  %v2524 = vrot.slane %v2510, %v2523
  %v2525 = vcombine.high %v2517, %v2517
  %v2526 = vcombine.high %v2524, %v2524
  %v2528 = vunpack.c.l.s4 1966171168
  %v2529 = vunpack.c.0.s8 %v2528
  %v2530 = vlaneseq
  %v2531 = vshrl.u32 %v2530, 7
  %v2532 = vsub.s32 %v2529, %v2531
  %v2533 = vrot.slane %v2517, %v2532
  %v2535 = vunpack.c.l.s4 1966171168
  %v2536 = vunpack.c.0.s8 %v2535
  %v2537 = vlaneseq
  %v2538 = vshrl.u32 %v2537, 7
  %v2539 = vsub.s32 %v2536, %v2538
  %v2540 = vrot.slane %v2524, %v2539
  %v2542 = vunpack.c.l.s4 1966171168
  %v2543 = vunpack.c.0.s8 %v2542
  %v2544 = vlaneseq
  %v2545 = vshrl.u32 %v2544, 7
  %v2546 = vsub.s32 %v2543, %v2545
  %v2547 = vrot.slane %v2525, %v2546
  %v2549 = vunpack.c.l.s4 1966171168
  %v2550 = vunpack.c.0.s8 %v2549
  %v2551 = vlaneseq
  %v2552 = vshrl.u32 %v2551, 7
  %v2553 = vsub.s32 %v2550, %v2552
  %v2554 = vrot.slane %v2526, %v2553
  %v2555 = vcombine.high %v2533, %v2533
  %v2556 = vcombine.high %v2540, %v2540
  %v2557 = vcombine.high %v2547, %v2547
  %v2558 = vcombine.high %v2554, %v2554
  %v2559 = vlaneseq
  %v2560 = vshrl.u32 %v2559, 7
  %v2561 = vsub.s32 0, %v2560
  %v2562 = vrot.slane %v2533, %v2561
  %v2563 = vlaneseq
  %v2564 = vshrl.u32 %v2563, 7
  %v2565 = vsub.s32 0, %v2564
  %v2566 = vrot.slane %v2547, %v2565
  %v2567 = vlaneseq
  %v2568 = vshrl.u32 %v2567, 7
  %v2569 = vsub.s32 0, %v2568
  %v2570 = vrot.slane %v2555, %v2569
  %v2571 = vlaneseq
  %v2572 = vshrl.u32 %v2571, 7
  %v2573 = vsub.s32 0, %v2572
  %v2574 = vrot.slane %v2557, %v2573
  %v2575 = vlaneseq
  %v2576 = vshrl.u32 %v2575, 7
  %v2577 = vsub.s32 0, %v2576
  %v2578 = vrot.slane %v2540, %v2577
  %v2579 = vlaneseq
  %v2580 = vshrl.u32 %v2579, 7
  %v2581 = vsub.s32 0, %v2580
  %v2582 = vrot.slane %v2554, %v2581
  %v2583 = vlaneseq
  %v2584 = vshrl.u32 %v2583, 7
  %v2585 = vsub.s32 0, %v2584
  %v2586 = vrot.slane %v2556, %v2585
  %v2587 = vlaneseq
  %v2588 = vshrl.u32 %v2587, 7
  %v2589 = vsub.s32 0, %v2588
  %v2590 = vrot.slane %v2558, %v2589
  %v2599 = vsub.f32 %v2562, %v2508
  %v2600 = vsub.f32 %v2566, %v2508
  %v2601 = vsub.f32 %v2570, %v2508
  %v2602 = vsub.f32 %v2574, %v2508
  %v2603 = vsub.f32 %v2578, %v2508
  %v2604 = vsub.f32 %v2582, %v2508
  %v2605 = vsub.f32 %v2586, %v2508
  %v2606 = vsub.f32 %v2590, %v2508
  %v2607 = vmul.f32 %v2599, %v2599
  %v2608 = vmul.f32 %v2600, %v2600
  %v2609 = vmul.f32 %v2601, %v2601
  %v2610 = vmul.f32 %v2602, %v2602
  %v2611 = vmul.f32 %v2603, %v2603
  %v2612 = vmul.f32 %v2604, %v2604
  %v2613 = vmul.f32 %v2605, %v2605
  %v2614 = vmul.f32 %v2606, %v2606
  %vm2615 = vcmask 1043456
  %v2616 = vsel %vm2615, %v2607, 0.0
  %2617 = vadd.xlane.f32.xlu0 %v2616
  %v2618 = vpop.xlane.xlu0 %2617
  %v2619 = vsel %vm2615, %v2608, 0.0
  %2620 = vadd.xlane.f32.xlu0 %v2619
  %v2621 = vpop.xlane.xlu0 %2620
  %v2622 = vsel %vm2615, %v2609, 0.0
  %2623 = vadd.xlane.f32.xlu0 %v2622
  %v2624 = vpop.xlane.xlu0 %2623
  %v2625 = vsel %vm2615, %v2610, 0.0
  %2626 = vadd.xlane.f32.xlu0 %v2625
  %v2627 = vpop.xlane.xlu0 %2626
  %v2628 = vsel %vm2615, %v2611, 0.0
  %2629 = vadd.xlane.f32.xlu0 %v2628
  %v2630 = vpop.xlane.xlu0 %2629
  %v2631 = vsel %vm2615, %v2612, 0.0
  %2632 = vadd.xlane.f32.xlu0 %v2631
  %v2633 = vpop.xlane.xlu0 %2632
  %v2634 = vsel %vm2615, %v2613, 0.0
  %2635 = vadd.xlane.f32.xlu0 %v2634
  %v2636 = vpop.xlane.xlu0 %2635
  %v2637 = vsel %vm2615, %v2614, 0.0
  %2638 = vadd.xlane.f32.xlu0 %v2637
  %v2639 = vpop.xlane.xlu0 %2638
  %v2640 = vsub.f32 0.0, %v2618
  %v2641 = vsub.f32 0.0, %v2621
  %v2642 = vsub.f32 0.0, %v2624
  %v2643 = vsub.f32 0.0, %v2627
  %v2644 = vsub.f32 0.0, %v2630
  %v2645 = vsub.f32 0.0, %v2633
  %v2646 = vsub.f32 0.0, %v2636
  %v2647 = vsub.f32 0.0, %v2639
  %v2656 = vlaneseq
  %v2657 = vand.u32 %v2656, 127
  %v2658 = vlaneseq
  %v2659 = vshrl.u32 %v2658, 7
  %v2660 = vsub.s32 %v2657, %v2659
  %v2661 = vrot.slane %v2640, %v2660
  %v2662 = vlaneseq
  %v2663 = vshrl.u32 %v2662, 7
  %v2664 = vsub.s32 %v2657, %v2663
  %v2665 = vrot.slane %v2641, %v2664
  %v2666 = vlaneseq
  %v2667 = vshrl.u32 %v2666, 7
  %v2668 = vsub.s32 %v2657, %v2667
  %v2669 = vrot.slane %v2642, %v2668
  %v2670 = vlaneseq
  %v2671 = vshrl.u32 %v2670, 7
  %v2672 = vsub.s32 %v2657, %v2671
  %v2673 = vrot.slane %v2643, %v2672
  %v2674 = vlaneseq
  %v2675 = vshrl.u32 %v2674, 7
  %v2676 = vsub.s32 %v2657, %v2675
  %v2677 = vrot.slane %v2644, %v2676
  %v2678 = vlaneseq
  %v2679 = vshrl.u32 %v2678, 7
  %v2680 = vsub.s32 %v2657, %v2679
  %v2681 = vrot.slane %v2645, %v2680
  %v2682 = vlaneseq
  %v2683 = vshrl.u32 %v2682, 7
  %v2684 = vsub.s32 %v2657, %v2683
  %v2685 = vrot.slane %v2646, %v2684
  %v2686 = vlaneseq
  %v2687 = vshrl.u32 %v2686, 7
  %v2688 = vsub.s32 %v2657, %v2687
  %v2689 = vrot.slane %v2647, %v2688
  %vm2690 = vcmask 1041409
  %v2691 = vsel %vm2690, %v2665, %v2661
  %vm2692 = vcmask 1042434
  %v2693 = vsel %vm2692, %v2669, %v2691
  %vm2694 = vcmask 1043459
  %v2695 = vsel %vm2694, %v2673, %v2693
  %vm2696 = vcmask 1044484
  %v2697 = vsel %vm2696, %v2677, %v2695
  %vm2698 = vcmask 1045509
  %v2699 = vsel %vm2698, %v2681, %v2697
  %vm2700 = vcmask 1046534
  %v2701 = vsel %vm2700, %v2685, %v2699
  %vm2702 = vcmask 1047559
  %v2703 = vsel %vm2702, %v2689, %v2701
  %vm2705 = vcmask 31744
  %2706 = vst.msk [vmem:[%s3] sm:$0xff] %vm2705, %v2703
  %v2707 = vmul.f32 %v2505, 0.33333334
  %v2710 = vcombine.high %v2500, %v2500
  %v2712 = vunpack.c.l.s4 1966171168
  %v2713 = vunpack.c.0.s8 %v2712
  %v2714 = vlaneseq
  %v2715 = vshrl.u32 %v2714, 7
  %v2716 = vsub.s32 %v2713, %v2715
  %v2717 = vrot.slane %v2710, %v2716
  %v2718 = vcombine.high %v2717, %v2717
  %v2720 = vunpack.c.l.s4 1966171168
  %v2721 = vunpack.c.0.s8 %v2720
  %v2722 = vlaneseq
  %v2723 = vshrl.u32 %v2722, 7
  %v2724 = vsub.s32 %v2721, %v2723
  %v2725 = vrot.slane %v2717, %v2724
  %v2727 = vunpack.c.l.s4 1966171168
  %v2728 = vunpack.c.0.s8 %v2727
  %v2729 = vlaneseq
  %v2730 = vshrl.u32 %v2729, 7
  %v2731 = vsub.s32 %v2728, %v2730
  %v2732 = vrot.slane %v2718, %v2731
  %v2733 = vcombine.high %v2725, %v2725
  %v2734 = vcombine.high %v2732, %v2732
  %v2736 = vunpack.c.l.s4 1966171168
  %v2737 = vunpack.c.0.s8 %v2736
  %v2738 = vlaneseq
  %v2739 = vshrl.u32 %v2738, 7
  %v2740 = vsub.s32 %v2737, %v2739
  %v2741 = vrot.slane %v2505, %v2740
  %v2742 = vcombine.high %v2741, %v2741
  %v2744 = vunpack.c.l.s4 1966171168
  %v2745 = vunpack.c.0.s8 %v2744
  %v2746 = vlaneseq
  %v2747 = vshrl.u32 %v2746, 7
  %v2748 = vsub.s32 %v2745, %v2747
  %v2749 = vrot.slane %v2741, %v2748
  %v2751 = vunpack.c.l.s4 1966171168
  %v2752 = vunpack.c.0.s8 %v2751
  %v2753 = vlaneseq
  %v2754 = vshrl.u32 %v2753, 7
  %v2755 = vsub.s32 %v2752, %v2754
  %v2756 = vrot.slane %v2742, %v2755
  %v2757 = vcombine.high %v2749, %v2749
  %v2758 = vcombine.high %v2756, %v2756
  %v2759 = vlaneseq
  %v2760 = vshrl.u32 %v2759, 7
  %v2761 = vsub.s32 0, %v2760
  %v2762 = vrot.slane %v2725, %v2761
  %v2763 = vlaneseq
  %v2764 = vshrl.u32 %v2763, 7
  %v2765 = vsub.s32 0, %v2764
  %v2766 = vrot.slane %v2732, %v2765
  %v2767 = vlaneseq
  %v2768 = vshrl.u32 %v2767, 7
  %v2769 = vsub.s32 0, %v2768
  %v2770 = vrot.slane %v2733, %v2769
  %v2771 = vlaneseq
  %v2772 = vshrl.u32 %v2771, 7
  %v2773 = vsub.s32 0, %v2772
  %v2774 = vrot.slane %v2734, %v2773
  %v2775 = vlaneseq
  %v2776 = vshrl.u32 %v2775, 7
  %v2777 = vsub.s32 0, %v2776
  %v2778 = vrot.slane %v2749, %v2777
  %v2779 = vlaneseq
  %v2780 = vshrl.u32 %v2779, 7
  %v2781 = vsub.s32 0, %v2780
  %v2782 = vrot.slane %v2756, %v2781
  %v2783 = vlaneseq
  %v2784 = vshrl.u32 %v2783, 7
  %v2785 = vsub.s32 0, %v2784
  %v2786 = vrot.slane %v2757, %v2785
  %v2787 = vlaneseq
  %v2788 = vshrl.u32 %v2787, 7
  %v2789 = vsub.s32 0, %v2788
  %v2790 = vrot.slane %v2758, %v2789
  %v2799 = vsub.f32 %v2762, %v2707
  %v2800 = vsub.f32 %v2766, %v2707
  %v2801 = vsub.f32 %v2770, %v2707
  %v2802 = vsub.f32 %v2774, %v2707
  %v2803 = vsub.f32 %v2778, %v2707
  %v2804 = vsub.f32 %v2782, %v2707
  %v2805 = vsub.f32 %v2786, %v2707
  %v2806 = vsub.f32 %v2790, %v2707
  %v2807 = vmul.f32 %v2799, %v2799
  %v2808 = vmul.f32 %v2800, %v2800
  %v2809 = vmul.f32 %v2801, %v2801
  %v2810 = vmul.f32 %v2802, %v2802
  %v2811 = vmul.f32 %v2803, %v2803
  %v2812 = vmul.f32 %v2804, %v2804
  %v2813 = vmul.f32 %v2805, %v2805
  %v2814 = vmul.f32 %v2806, %v2806
  %vm2815 = vcmask 1047556
  %v2816 = vsel %vm2815, %v2807, 0.0
  %2817 = vadd.xlane.f32.xlu0 %v2816
  %v2818 = vpop.xlane.xlu0 %2817
  %v2819 = vsel %vm2815, %v2808, 0.0
  %2820 = vadd.xlane.f32.xlu0 %v2819
  %v2821 = vpop.xlane.xlu0 %2820
  %v2822 = vsel %vm2815, %v2809, 0.0
  %2823 = vadd.xlane.f32.xlu0 %v2822
  %v2824 = vpop.xlane.xlu0 %2823
  %v2825 = vsel %vm2815, %v2810, 0.0
  %2826 = vadd.xlane.f32.xlu0 %v2825
  %v2827 = vpop.xlane.xlu0 %2826
  %v2828 = vsel %vm2815, %v2811, 0.0
  %2829 = vadd.xlane.f32.xlu0 %v2828
  %v2830 = vpop.xlane.xlu0 %2829
  %v2831 = vsel %vm2815, %v2812, 0.0
  %2832 = vadd.xlane.f32.xlu0 %v2831
  %v2833 = vpop.xlane.xlu0 %2832
  %v2834 = vsel %vm2815, %v2813, 0.0
  %2835 = vadd.xlane.f32.xlu0 %v2834
  %v2836 = vpop.xlane.xlu0 %2835
  %v2837 = vsel %vm2815, %v2814, 0.0
  %2838 = vadd.xlane.f32.xlu0 %v2837
  %v2839 = vpop.xlane.xlu0 %2838
  %v2840 = vsub.f32 0.0, %v2818
  %v2841 = vsub.f32 0.0, %v2821
  %v2842 = vsub.f32 0.0, %v2824
  %v2843 = vsub.f32 0.0, %v2827
  %v2844 = vsub.f32 0.0, %v2830
  %v2845 = vsub.f32 0.0, %v2833
  %v2846 = vsub.f32 0.0, %v2836
  %v2847 = vsub.f32 0.0, %v2839
  %v2856 = vadd.s32 %v2657, 4
  %v2857 = vlaneseq
  %v2858 = vshrl.u32 %v2857, 7
  %v2859 = vsub.s32 %v2856, %v2858
  %v2860 = vrot.slane %v2840, %v2859
  %v2861 = vlaneseq
  %v2862 = vshrl.u32 %v2861, 7
  %v2863 = vsub.s32 %v2856, %v2862
  %v2864 = vrot.slane %v2841, %v2863
  %v2865 = vlaneseq
  %v2866 = vshrl.u32 %v2865, 7
  %v2867 = vsub.s32 %v2856, %v2866
  %v2868 = vrot.slane %v2842, %v2867
  %v2869 = vlaneseq
  %v2870 = vshrl.u32 %v2869, 7
  %v2871 = vsub.s32 %v2856, %v2870
  %v2872 = vrot.slane %v2843, %v2871
  %v2873 = vlaneseq
  %v2874 = vshrl.u32 %v2873, 7
  %v2875 = vsub.s32 %v2856, %v2874
  %v2876 = vrot.slane %v2844, %v2875
  %v2877 = vlaneseq
  %v2878 = vshrl.u32 %v2877, 7
  %v2879 = vsub.s32 %v2856, %v2878
  %v2880 = vrot.slane %v2845, %v2879
  %v2881 = vlaneseq
  %v2882 = vshrl.u32 %v2881, 7
  %v2883 = vsub.s32 %v2856, %v2882
  %v2884 = vrot.slane %v2846, %v2883
  %v2885 = vlaneseq
  %v2886 = vshrl.u32 %v2885, 7
  %v2887 = vsub.s32 %v2856, %v2886
  %v2888 = vrot.slane %v2847, %v2887
  %v2889 = vsel %vm2698, %v2864, %v2860
  %v2890 = vsel %vm2700, %v2868, %v2889
  %v2891 = vsel %vm2702, %v2872, %v2890
  %v2892 = vsel %vm2690, %v2880, %v2876
  %v2893 = vsel %vm2692, %v2884, %v2892
  %v2894 = vsel %vm2694, %v2888, %v2893
  %s2897 = scalar_lea.vmem %s3, 8
  %vm2898 = vcmask 31748
  %2899 = vst.msk [vmem:[%s2897 - $0x4] sm:$0xf0] %vm2898, %v2891
  %vm2900 = vcmask 27648
  %2901 = vst.msk [vmem:[%s2897 + $0x4] sm:$0xf] %vm2900, %v2894
  // Predicated region
  $region14: #{prototypical_forward.1} parent=0 // pred_check
    _
  $region15: #{prototypical_forward.1} parent=0 // pred_check_branch
    %2903 = sbr.rel (0) target = $region17
  $region16: #{prototypical_forward.1} parent=0 // pred_region
    _
  $region17: #{prototypical_forward.1} parent=0 // pred_fallthru
    _
  // Predicated region
  $region18: #{prototypical_forward.1} parent=0 // pred_check
    _
  $region19: #{prototypical_forward.1} parent=0 // pred_check_branch
    %2905 = sbr.rel (0) target = $region21
  $region20: #{prototypical_forward.1} parent=0 // pred_region
    _
  $region21: #{prototypical_forward.1} parent=0 // pred_fallthru
    _

</llo_original>
